<compile_context>
chip_gen: v7x
topology: tpu7x:2x2x1
jax: 0.10.0
libtpu: 0.0.40
codegen_flags: <defaults>
</compile_context>

<pallas_src>
import functools

import jax
import jax.numpy as jnp
from jax.experimental import pallas as pl
from jax.experimental.pallas import tpu as pltpu


def topic_model_kernel(x_ref, we1_ref, be1_ref, we2_ref, be2_ref,
                       wihT_ref, whhT_ref, bg_ref,
                       w1tT_ref, bt1_ref, wt2T_ref, bt2_ref,
                       gum_ref, gb_ref, ga_ref,
                       xhat_ref, theta_ref, logits_ref,
                       *, B, V, H, D, K, tau):
    f32 = jnp.float32
    bf16 = jnp.bfloat16

    x = x_ref[...]                      # (B, V)   f32
    we1 = we1_ref[...]                  # (H, 1)   f32   Linear(1, H) weight
    be1 = be1_ref[...]                  # (H, 1)   f32
    we2 = we2_ref[...]                  # (H, H)   bf16  Linear(H, H) weight
    be2 = be2_ref[...]                  # (H, 1)   f32
    wihT = wihT_ref[...]                # (V, 4D)  bf16  W_ih.T
    whhT = whhT_ref[...]                # (D, 4D)  bf16  W_hh.T
    bg = bg_ref[...]                    # (1, 4D)  f32   b_ih + b_hh
    w1tT = w1tT_ref[...]                # (H*D, H) bf16  W_t1.T, row index = t*D + d
    bt1 = bt1_ref[...]                  # (1, H)   f32
    wt2T = wt2T_ref[...]                # (H, K)   bf16  W_t2.T
    bt2 = bt2_ref[...]                  # (1, K)   f32

    # -----------------------------------------------------------------------------
    # Embed layer + all-timestep LSTM input projection (hoisted out of recurrence).
    # For batch row b:
    #   r_bT[h, v] = relu(W_e1[h] * x[b, v] + b_e1[h])                 (H, V)
    #   e_bT[t, v] = (W_e2 @ r_bT)[t, v] + b_e2[t]                     (H, V)
    #   gx_b[t, :] = e_t[b, :] @ W_ih.T + (b_ih + b_hh)                (H, 4D)
    # Two 2-D MXU matmuls per batch row; no per-timestep embed work remains.
    # -----------------------------------------------------------------------------
    gx = []
    for b in range(B):
        x_row = x[b:b + 1, :]                                           # (1, V)
        r_bT = jnp.maximum(we1 * x_row + be1, 0.0)                      # (H, V) f32
        e_bT = jnp.dot(we2, r_bT.astype(bf16),
                       preferred_element_type=f32) + be2                # (H, V) f32
        gx_b = jnp.dot(e_bT.astype(bf16), wihT,
                       preferred_element_type=f32) + bg                 # (H, 4D) f32
        gx.append(gx_b)

    # -----------------------------------------------------------------------------
    # LSTM recurrence, fully unrolled (single grid step, no per-step pipeline cost).
    # PyTorch gate order: i, f, g, o;  c' = f*c + i*g;  h' = o*tanh(c').
    # -----------------------------------------------------------------------------
    h = jnp.zeros((B, D), f32)
    c = jnp.zeros((B, D), f32)
    acc = jnp.zeros((B, H), f32)        # accumulates flatten(h, 1, 2) @ W_t1.T
    for t in range(H):
        gxt = jnp.concatenate([gx[b][t:t + 1, :] for b in range(B)], axis=0)  # (B, 4D)
        gates = gxt + jnp.dot(h.astype(bf16), whhT, preferred_element_type=f32)
        i_g = jax.nn.sigmoid(gates[:, 0:D])
        f_g = jax.nn.sigmoid(gates[:, D:2 * D])
        g_g = jnp.tanh(gates[:, 2 * D:3 * D])
        o_g = jax.nn.sigmoid(gates[:, 3 * D:4 * D])
        c = f_g * c + i_g * g_g
        h = o_g * jnp.tanh(c)
        acc = acc + jnp.dot(h.astype(bf16), w1tT[t * D:(t + 1) * D, :],
                            preferred_element_type=f32)

    # -----------------------------------------------------------------------------
    # topic_layer: Linear -> ReLU -> Linear -> LogSoftmax
    # -----------------------------------------------------------------------------
    a1 = jnp.maximum(acc + bt1, 0.0)                                    # (B, H)
    lp = jnp.dot(a1.astype(bf16), wt2T, preferred_element_type=f32) + bt2   # (B, K)
    m = jnp.max(lp, axis=-1, keepdims=True)
    lse = m + jnp.log(jnp.sum(jnp.exp(lp - m), axis=-1, keepdims=True))
    logits = lp - lse
    logits_ref[...] = logits

    # Sample_Categorical(tau): Gumbel-softmax relaxation.
    y = (logits + gum_ref[...]) * (1.0 / tau)
    ym = jnp.max(y, axis=-1, keepdims=True)
    ey = jnp.exp(y - ym)
    z = ey / jnp.sum(ey, axis=-1, keepdims=True)                        # (B, K)

    # TopicForward: Sample_Dirichlet(exp(beta)) -> gamma, then xhat = z @ gamma.
    gb = gb_ref[...]                                                    # (K, V)
    gamma = gb / jnp.sum(gb, axis=-1, keepdims=True)
    xhat_ref[...] = jnp.dot(z.astype(bf16), gamma.astype(bf16),
                            preferred_element_type=f32)                 # (B, V)

    # TopicPrior: Dirichlet(exp(alpha)) per batch row.
    ga = ga_ref[...]                                                    # (B, K)
    theta_ref[...] = ga / jnp.sum(ga, axis=-1, keepdims=True)


def topic_model_forward(x, params, noise, *, tau):
    B, V = x.shape
    H = params["we2"].shape[0]
    D = params["whhT"].shape[0]
    K = params["bt2"].shape[1]
    vmem = pl.BlockSpec(memory_space=pltpu.MemorySpace.VMEM)

    kernel = functools.partial(topic_model_kernel, B=B, V=V, H=H, D=D, K=K, tau=tau)
    xhat, theta, logits = pl.pallas_call(
        kernel,
        out_shape=(jax.ShapeDtypeStruct((B, V), jnp.float32),
                   jax.ShapeDtypeStruct((B, K), jnp.float32),
                   jax.ShapeDtypeStruct((B, K), jnp.float32)),
        in_specs=[vmem] * 15,
        out_specs=(vmem, vmem, vmem),
    )(x, params["we1"], params["be1"], params["we2"], params["be2"],
      params["wihT"], params["whhT"], params["bg"],
      params["w1tT"], params["bt1"], params["wt2T"], params["bt2"],
      noise["gumbel"], noise["gamma_beta"], noise["gamma_alpha"])
    return xhat, theta, logits


if __name__ == "__main__":
    # Small shapes consistent with the module: V vocab, K topics, H embed, D lstm hidden.
    B, V, K, H, D = 2, 16, 8, 8, 8
    tau = 0.5

    key = jax.random.PRNGKey(0)
    keys = jax.random.split(key, 16)
    u = lambda k, s: jax.random.uniform(k, s, jnp.float32, -0.2, 0.2)

    # --- deterministic synthetic parameters (PyTorch layer shapes) ---
    W_e1 = u(keys[0], (H, 1));      b_e1 = u(keys[1], (H,))          # Linear(1, H)
    W_e2 = u(keys[2], (H, H));      b_e2 = u(keys[3], (H,))          # Linear(H, H)
    W_ih = u(keys[4], (4 * D, V));  W_hh = u(keys[5], (4 * D, D))    # LSTM(V, D)
    b_ih = u(keys[6], (4 * D,));    b_hh = u(keys[7], (4 * D,))
    W_t1 = u(keys[8], (H, D * H));  b_t1 = u(keys[9], (H,))          # Linear(D*H, H)
    W_t2 = u(keys[10], (K, H));     b_t2 = u(keys[11], (K,))         # Linear(H, K)
    beta = u(keys[12], (K, V))                                       # TopicForward.beta
    alpha = u(keys[13], (1, K))                                      # TopicPrior.alpha

    bf16 = jnp.bfloat16
    params = dict(
        we1=W_e1,                                   # (H, 1)  f32
        be1=b_e1.reshape(H, 1),
        we2=W_e2.astype(bf16),                      # (H, H)  bf16  (MXU operand)
        be2=b_e2.reshape(H, 1),
        wihT=W_ih.T.astype(bf16),                   # (V, 4D) bf16
        whhT=W_hh.T.astype(bf16),                   # (D, 4D) bf16
        bg=(b_ih + b_hh).reshape(1, 4 * D),
        w1tT=W_t1.T.astype(bf16),                   # (D*H, H) bf16, row = t*D + d
        bt1=b_t1.reshape(1, H),
        wt2T=W_t2.T.astype(bf16),                   # (H, K)  bf16
        bt2=b_t2.reshape(1, K),
    )

    x = jax.random.uniform(keys[14], (B, V), jnp.float32, 0.0, 1.0)

    # --- sampling noise (host-side glue) ---
    # TODO(synk): Gamma / Gumbel random draws have no clean in-kernel Pallas equivalent;
    # draws come from jax.random, the Dirichlet / Gumbel-softmax normalization math
    # runs inside the kernel.
    nk = jax.random.split(keys[15], 3)
    uu = jax.random.uniform(nk[0], (B, K), jnp.float32, 1e-6, 1.0 - 1e-6)
    noise = dict(
        gumbel=-jnp.log(-jnp.log(uu)),
        gamma_beta=jax.random.gamma(nk[1], jnp.exp(beta)),                          # (K, V)
        gamma_alpha=jax.random.gamma(nk[2], jnp.broadcast_to(jnp.exp(alpha), (B, K))),
    )

    xhat, theta, logits = topic_model_forward(x, params, noise, tau=tau)
    jax.block_until_ready((xhat, theta, logits))

    assert xhat.shape == (B, V) and theta.shape == (B, K) and logits.shape == (B, K)
    assert bool(jnp.all(jnp.isfinite(xhat)))
    assert bool(jnp.all(jnp.isfinite(theta)))
    assert bool(jnp.all(jnp.isfinite(logits)))
    assert bool(jnp.allclose(jnp.sum(jnp.exp(logits), axis=-1), 1.0, atol=1e-3))
    assert bool(jnp.allclose(jnp.sum(theta, axis=-1), 1.0, atol=1e-3))
    print("KERNEL_OK")
</pallas_src>

<mosaic_0001>
module attributes {stable_mosaic.version = 11 : i64} {
  func.func @topic_model_kernel(%arg0: memref<2x16xf32, #tpu.memory_space<vmem>>, %arg1: memref<8x1xf32, #tpu.memory_space<vmem>>, %arg2: memref<8x1xf32, #tpu.memory_space<vmem>>, %arg3: memref<8x8xbf16, #tpu.memory_space<vmem>>, %arg4: memref<8x1xf32, #tpu.memory_space<vmem>>, %arg5: memref<16x32xbf16, #tpu.memory_space<vmem>>, %arg6: memref<8x32xbf16, #tpu.memory_space<vmem>>, %arg7: memref<1x32xf32, #tpu.memory_space<vmem>>, %arg8: memref<64x8xbf16, #tpu.memory_space<vmem>>, %arg9: memref<1x8xf32, #tpu.memory_space<vmem>>, %arg10: memref<8x8xbf16, #tpu.memory_space<vmem>>, %arg11: memref<1x8xf32, #tpu.memory_space<vmem>>, %arg12: memref<2x8xf32, #tpu.memory_space<vmem>>, %arg13: memref<8x16xf32, #tpu.memory_space<vmem>>, %arg14: memref<2x8xf32, #tpu.memory_space<vmem>>, %arg15: memref<2x16xf32, #tpu.memory_space<vmem>>, %arg16: memref<2x8xf32, #tpu.memory_space<vmem>>, %arg17: memref<2x8xf32, #tpu.memory_space<vmem>>) attributes {dimension_semantics = [], scalar_prefetch = 0 : i64, scratch_operands = 0 : i64, tpu.core_type = #tpu.core_type<tc>} {
    %c0 = arith.constant 0 : index
    %c0_0 = arith.constant 0 : index
    %0 = vector.load %arg0[%c0, %c0_0] : memref<2x16xf32, #tpu.memory_space<vmem>>, vector<2x16xf32>
    %c0_1 = arith.constant 0 : index
    %c0_2 = arith.constant 0 : index
    %1 = vector.load %arg1[%c0_1, %c0_2] : memref<8x1xf32, #tpu.memory_space<vmem>>, vector<8x1xf32>
    %c0_3 = arith.constant 0 : index
    %c0_4 = arith.constant 0 : index
    %2 = vector.load %arg2[%c0_3, %c0_4] : memref<8x1xf32, #tpu.memory_space<vmem>>, vector<8x1xf32>
    %c0_5 = arith.constant 0 : index
    %c0_6 = arith.constant 0 : index
    %3 = vector.load %arg3[%c0_5, %c0_6] : memref<8x8xbf16, #tpu.memory_space<vmem>>, vector<8x8xbf16>
    %c0_7 = arith.constant 0 : index
    %c0_8 = arith.constant 0 : index
    %4 = vector.load %arg4[%c0_7, %c0_8] : memref<8x1xf32, #tpu.memory_space<vmem>>, vector<8x1xf32>
    %c0_9 = arith.constant 0 : index
    %c0_10 = arith.constant 0 : index
    %5 = vector.load %arg5[%c0_9, %c0_10] : memref<16x32xbf16, #tpu.memory_space<vmem>>, vector<16x32xbf16>
    %c0_11 = arith.constant 0 : index
    %c0_12 = arith.constant 0 : index
    %6 = vector.load %arg6[%c0_11, %c0_12] : memref<8x32xbf16, #tpu.memory_space<vmem>>, vector<8x32xbf16>
    %c0_13 = arith.constant 0 : index
    %c0_14 = arith.constant 0 : index
    %7 = vector.load %arg7[%c0_13, %c0_14] : memref<1x32xf32, #tpu.memory_space<vmem>>, vector<1x32xf32>
    %c0_15 = arith.constant 0 : index
    %c0_16 = arith.constant 0 : index
    %8 = vector.load %arg8[%c0_15, %c0_16] : memref<64x8xbf16, #tpu.memory_space<vmem>>, vector<64x8xbf16>
    %c0_17 = arith.constant 0 : index
    %c0_18 = arith.constant 0 : index
    %9 = vector.load %arg9[%c0_17, %c0_18] : memref<1x8xf32, #tpu.memory_space<vmem>>, vector<1x8xf32>
    %c0_19 = arith.constant 0 : index
    %c0_20 = arith.constant 0 : index
    %10 = vector.load %arg10[%c0_19, %c0_20] : memref<8x8xbf16, #tpu.memory_space<vmem>>, vector<8x8xbf16>
    %c0_21 = arith.constant 0 : index
    %c0_22 = arith.constant 0 : index
    %11 = vector.load %arg11[%c0_21, %c0_22] : memref<1x8xf32, #tpu.memory_space<vmem>>, vector<1x8xf32>
    %12 = vector.extract_strided_slice %0 {offsets = [0, 0], sizes = [1, 16], strides = [1, 1]} : vector<2x16xf32> to vector<1x16xf32>
    %13 = vector.broadcast %1 : vector<8x1xf32> to vector<8x16xf32>
    %14 = vector.broadcast %12 : vector<1x16xf32> to vector<8x16xf32>
    %15 = arith.mulf %13, %14 : vector<8x16xf32>
    %16 = vector.broadcast %2 : vector<8x1xf32> to vector<8x16xf32>
    %17 = arith.addf %15, %16 : vector<8x16xf32>
    %cst = arith.constant 0.000000e+00 : f32
    %18 = vector.broadcast %cst : f32 to vector<8x16xf32>
    %19 = arith.maximumf %17, %18 : vector<8x16xf32>
    %20 = arith.truncf %19 : vector<8x16xf32> to vector<8x16xbf16>
    %cst_23 = arith.constant dense<0.000000e+00> : vector<8x16xf32>
    %21 = tpu.matmul %3, %20, %cst_23 {dimension_numbers = #tpu.dot_dimension_numbers<[1], [0], [0], [1], [0, 0, 1, 1], [], []>} : vector<8x8xbf16>, vector<8x16xbf16>, vector<8x16xf32> -> vector<8x16xf32>
    %22 = vector.broadcast %4 : vector<8x1xf32> to vector<8x16xf32>
    %23 = arith.addf %21, %22 : vector<8x16xf32>
    %24 = arith.truncf %23 : vector<8x16xf32> to vector<8x16xbf16>
    %cst_24 = arith.constant dense<0.000000e+00> : vector<8x32xf32>
    %25 = tpu.matmul %24, %5, %cst_24 {dimension_numbers = #tpu.dot_dimension_numbers<[1], [0], [0], [1], [0, 0, 1, 1], [], []>} : vector<8x16xbf16>, vector<16x32xbf16>, vector<8x32xf32> -> vector<8x32xf32>
    %26 = vector.broadcast %7 : vector<1x32xf32> to vector<8x32xf32>
    %27 = arith.addf %25, %26 : vector<8x32xf32>
    %28 = vector.extract_strided_slice %0 {offsets = [1, 0], sizes = [1, 16], strides = [1, 1]} : vector<2x16xf32> to vector<1x16xf32>
    %29 = vector.broadcast %1 : vector<8x1xf32> to vector<8x16xf32>
    %30 = vector.broadcast %28 : vector<1x16xf32> to vector<8x16xf32>
    %31 = arith.mulf %29, %30 : vector<8x16xf32>
    %32 = vector.broadcast %2 : vector<8x1xf32> to vector<8x16xf32>
    %33 = arith.addf %31, %32 : vector<8x16xf32>
    %cst_25 = arith.constant 0.000000e+00 : f32
    %34 = vector.broadcast %cst_25 : f32 to vector<8x16xf32>
    %35 = arith.maximumf %33, %34 : vector<8x16xf32>
    %36 = arith.truncf %35 : vector<8x16xf32> to vector<8x16xbf16>
    %cst_26 = arith.constant dense<0.000000e+00> : vector<8x16xf32>
    %37 = tpu.matmul %3, %36, %cst_26 {dimension_numbers = #tpu.dot_dimension_numbers<[1], [0], [0], [1], [0, 0, 1, 1], [], []>} : vector<8x8xbf16>, vector<8x16xbf16>, vector<8x16xf32> -> vector<8x16xf32>
    %38 = vector.broadcast %4 : vector<8x1xf32> to vector<8x16xf32>
    %39 = arith.addf %37, %38 : vector<8x16xf32>
    %40 = arith.truncf %39 : vector<8x16xf32> to vector<8x16xbf16>
    %cst_27 = arith.constant dense<0.000000e+00> : vector<8x32xf32>
    %41 = tpu.matmul %40, %5, %cst_27 {dimension_numbers = #tpu.dot_dimension_numbers<[1], [0], [0], [1], [0, 0, 1, 1], [], []>} : vector<8x16xbf16>, vector<16x32xbf16>, vector<8x32xf32> -> vector<8x32xf32>
    %42 = vector.broadcast %7 : vector<1x32xf32> to vector<8x32xf32>
    %43 = arith.addf %41, %42 : vector<8x32xf32>
    %cst_28 = arith.constant 0.000000e+00 : f32
    %44 = vector.broadcast %cst_28 : f32 to vector<2x8xf32>
    %cst_29 = arith.constant 0.000000e+00 : f32
    %45 = vector.broadcast %cst_29 : f32 to vector<2x8xf32>
    %cst_30 = arith.constant 0.000000e+00 : f32
    %46 = vector.broadcast %cst_30 : f32 to vector<2x8xf32>
    %47 = vector.extract_strided_slice %27 {offsets = [0, 0], sizes = [1, 32], strides = [1, 1]} : vector<8x32xf32> to vector<1x32xf32>
    %48 = vector.extract_strided_slice %43 {offsets = [0, 0], sizes = [1, 32], strides = [1, 1]} : vector<8x32xf32> to vector<1x32xf32>
    %49 = tpu.concatenate %47, %48 in 0 : vector<1x32xf32>, vector<1x32xf32> -> vector<2x32xf32>
    %50 = arith.truncf %44 : vector<2x8xf32> to vector<2x8xbf16>
    %cst_31 = arith.constant dense<0.000000e+00> : vector<2x32xf32>
    %51 = tpu.matmul %50, %6, %cst_31 {dimension_numbers = #tpu.dot_dimension_numbers<[1], [0], [0], [1], [0, 0, 1, 1], [], []>} : vector<2x8xbf16>, vector<8x32xbf16>, vector<2x32xf32> -> vector<2x32xf32>
    %52 = arith.addf %49, %51 : vector<2x32xf32>
    %53 = vector.extract_strided_slice %52 {offsets = [0, 0], sizes = [2, 8], strides = [1, 1]} : vector<2x32xf32> to vector<2x8xf32>
    %54 = arith.negf %53 : vector<2x8xf32>
    %55 = math.exp %54 : vector<2x8xf32>
    %cst_32 = arith.constant 1.000000e+00 : f32
    %56 = vector.broadcast %cst_32 : f32 to vector<2x8xf32>
    %57 = arith.addf %56, %55 : vector<2x8xf32>
    %58 = arith.divf %56, %57 : vector<2x8xf32>
    %59 = vector.extract_strided_slice %52 {offsets = [0, 8], sizes = [2, 8], strides = [1, 1]} : vector<2x32xf32> to vector<2x8xf32>
    %60 = arith.negf %59 : vector<2x8xf32>
    %61 = math.exp %60 : vector<2x8xf32>
    %cst_33 = arith.constant 1.000000e+00 : f32
    %62 = vector.broadcast %cst_33 : f32 to vector<2x8xf32>
    %63 = arith.addf %62, %61 : vector<2x8xf32>
    %64 = arith.divf %62, %63 : vector<2x8xf32>
    %65 = vector.extract_strided_slice %52 {offsets = [0, 16], sizes = [2, 8], strides = [1, 1]} : vector<2x32xf32> to vector<2x8xf32>
    %66 = math.tanh %65 : vector<2x8xf32>
    %67 = vector.extract_strided_slice %52 {offsets = [0, 24], sizes = [2, 8], strides = [1, 1]} : vector<2x32xf32> to vector<2x8xf32>
    %68 = arith.negf %67 : vector<2x8xf32>
    %69 = math.exp %68 : vector<2x8xf32>
    %cst_34 = arith.constant 1.000000e+00 : f32
    %70 = vector.broadcast %cst_34 : f32 to vector<2x8xf32>
    %71 = arith.addf %70, %69 : vector<2x8xf32>
    %72 = arith.divf %70, %71 : vector<2x8xf32>
    %73 = arith.mulf %64, %45 : vector<2x8xf32>
    %74 = arith.mulf %58, %66 : vector<2x8xf32>
    %75 = arith.addf %73, %74 : vector<2x8xf32>
    %76 = math.tanh %75 : vector<2x8xf32>
    %77 = arith.mulf %72, %76 : vector<2x8xf32>
    %78 = arith.truncf %77 : vector<2x8xf32> to vector<2x8xbf16>
    %79 = vector.extract_strided_slice %8 {offsets = [0, 0], sizes = [8, 8], strides = [1, 1]} : vector<64x8xbf16> to vector<8x8xbf16>
    %cst_35 = arith.constant dense<0.000000e+00> : vector<2x8xf32>
    %80 = tpu.matmul %78, %79, %cst_35 {dimension_numbers = #tpu.dot_dimension_numbers<[1], [0], [0], [1], [0, 0, 1, 1], [], []>} : vector<2x8xbf16>, vector<8x8xbf16>, vector<2x8xf32> -> vector<2x8xf32>
    %81 = arith.addf %46, %80 : vector<2x8xf32>
    %82 = vector.extract_strided_slice %27 {offsets = [1, 0], sizes = [1, 32], strides = [1, 1]} : vector<8x32xf32> to vector<1x32xf32>
    %83 = vector.extract_strided_slice %43 {offsets = [1, 0], sizes = [1, 32], strides = [1, 1]} : vector<8x32xf32> to vector<1x32xf32>
    %84 = tpu.concatenate %82, %83 in 0 : vector<1x32xf32>, vector<1x32xf32> -> vector<2x32xf32>
    %85 = arith.truncf %77 : vector<2x8xf32> to vector<2x8xbf16>
    %cst_36 = arith.constant dense<0.000000e+00> : vector<2x32xf32>
    %86 = tpu.matmul %85, %6, %cst_36 {dimension_numbers = #tpu.dot_dimension_numbers<[1], [0], [0], [1], [0, 0, 1, 1], [], []>} : vector<2x8xbf16>, vector<8x32xbf16>, vector<2x32xf32> -> vector<2x32xf32>
    %87 = arith.addf %84, %86 : vector<2x32xf32>
    %88 = vector.extract_strided_slice %87 {offsets = [0, 0], sizes = [2, 8], strides = [1, 1]} : vector<2x32xf32> to vector<2x8xf32>
    %89 = arith.negf %88 : vector<2x8xf32>
    %90 = math.exp %89 : vector<2x8xf32>
    %cst_37 = arith.constant 1.000000e+00 : f32
    %91 = vector.broadcast %cst_37 : f32 to vector<2x8xf32>
    %92 = arith.addf %91, %90 : vector<2x8xf32>
    %93 = arith.divf %91, %92 : vector<2x8xf32>
    %94 = vector.extract_strided_slice %87 {offsets = [0, 8], sizes = [2, 8], strides = [1, 1]} : vector<2x32xf32> to vector<2x8xf32>
    %95 = arith.negf %94 : vector<2x8xf32>
    %96 = math.exp %95 : vector<2x8xf32>
    %cst_38 = arith.constant 1.000000e+00 : f32
    %97 = vector.broadcast %cst_38 : f32 to vector<2x8xf32>
    %98 = arith.addf %97, %96 : vector<2x8xf32>
    %99 = arith.divf %97, %98 : vector<2x8xf32>
    %100 = vector.extract_strided_slice %87 {offsets = [0, 16], sizes = [2, 8], strides = [1, 1]} : vector<2x32xf32> to vector<2x8xf32>
    %101 = math.tanh %100 : vector<2x8xf32>
    %102 = vector.extract_strided_slice %87 {offsets = [0, 24], sizes = [2, 8], strides = [1, 1]} : vector<2x32xf32> to vector<2x8xf32>
    %103 = arith.negf %102 : vector<2x8xf32>
    %104 = math.exp %103 : vector<2x8xf32>
    %cst_39 = arith.constant 1.000000e+00 : f32
    %105 = vector.broadcast %cst_39 : f32 to vector<2x8xf32>
    %106 = arith.addf %105, %104 : vector<2x8xf32>
    %107 = arith.divf %105, %106 : vector<2x8xf32>
    %108 = arith.mulf %99, %75 : vector<2x8xf32>
    %109 = arith.mulf %93, %101 : vector<2x8xf32>
    %110 = arith.addf %108, %109 : vector<2x8xf32>
    %111 = math.tanh %110 : vector<2x8xf32>
    %112 = arith.mulf %107, %111 : vector<2x8xf32>
    %113 = arith.truncf %112 : vector<2x8xf32> to vector<2x8xbf16>
    %114 = vector.extract_strided_slice %8 {offsets = [8, 0], sizes = [8, 8], strides = [1, 1]} : vector<64x8xbf16> to vector<8x8xbf16>
    %cst_40 = arith.constant dense<0.000000e+00> : vector<2x8xf32>
    %115 = tpu.matmul %113, %114, %cst_40 {dimension_numbers = #tpu.dot_dimension_numbers<[1], [0], [0], [1], [0, 0, 1, 1], [], []>} : vector<2x8xbf16>, vector<8x8xbf16>, vector<2x8xf32> -> vector<2x8xf32>
    %116 = arith.addf %81, %115 : vector<2x8xf32>
    %117 = vector.extract_strided_slice %27 {offsets = [2, 0], sizes = [1, 32], strides = [1, 1]} : vector<8x32xf32> to vector<1x32xf32>
    %118 = vector.extract_strided_slice %43 {offsets = [2, 0], sizes = [1, 32], strides = [1, 1]} : vector<8x32xf32> to vector<1x32xf32>
    %119 = tpu.concatenate %117, %118 in 0 : vector<1x32xf32>, vector<1x32xf32> -> vector<2x32xf32>
    %120 = arith.truncf %112 : vector<2x8xf32> to vector<2x8xbf16>
    %cst_41 = arith.constant dense<0.000000e+00> : vector<2x32xf32>
    %121 = tpu.matmul %120, %6, %cst_41 {dimension_numbers = #tpu.dot_dimension_numbers<[1], [0], [0], [1], [0, 0, 1, 1], [], []>} : vector<2x8xbf16>, vector<8x32xbf16>, vector<2x32xf32> -> vector<2x32xf32>
    %122 = arith.addf %119, %121 : vector<2x32xf32>
    %123 = vector.extract_strided_slice %122 {offsets = [0, 0], sizes = [2, 8], strides = [1, 1]} : vector<2x32xf32> to vector<2x8xf32>
    %124 = arith.negf %123 : vector<2x8xf32>
    %125 = math.exp %124 : vector<2x8xf32>
    %cst_42 = arith.constant 1.000000e+00 : f32
    %126 = vector.broadcast %cst_42 : f32 to vector<2x8xf32>
    %127 = arith.addf %126, %125 : vector<2x8xf32>
    %128 = arith.divf %126, %127 : vector<2x8xf32>
    %129 = vector.extract_strided_slice %122 {offsets = [0, 8], sizes = [2, 8], strides = [1, 1]} : vector<2x32xf32> to vector<2x8xf32>
    %130 = arith.negf %129 : vector<2x8xf32>
    %131 = math.exp %130 : vector<2x8xf32>
    %cst_43 = arith.constant 1.000000e+00 : f32
    %132 = vector.broadcast %cst_43 : f32 to vector<2x8xf32>
    %133 = arith.addf %132, %131 : vector<2x8xf32>
    %134 = arith.divf %132, %133 : vector<2x8xf32>
    %135 = vector.extract_strided_slice %122 {offsets = [0, 16], sizes = [2, 8], strides = [1, 1]} : vector<2x32xf32> to vector<2x8xf32>
    %136 = math.tanh %135 : vector<2x8xf32>
    %137 = vector.extract_strided_slice %122 {offsets = [0, 24], sizes = [2, 8], strides = [1, 1]} : vector<2x32xf32> to vector<2x8xf32>
    %138 = arith.negf %137 : vector<2x8xf32>
    %139 = math.exp %138 : vector<2x8xf32>
    %cst_44 = arith.constant 1.000000e+00 : f32
    %140 = vector.broadcast %cst_44 : f32 to vector<2x8xf32>
    %141 = arith.addf %140, %139 : vector<2x8xf32>
    %142 = arith.divf %140, %141 : vector<2x8xf32>
    %143 = arith.mulf %134, %110 : vector<2x8xf32>
    %144 = arith.mulf %128, %136 : vector<2x8xf32>
    %145 = arith.addf %143, %144 : vector<2x8xf32>
    %146 = math.tanh %145 : vector<2x8xf32>
    %147 = arith.mulf %142, %146 : vector<2x8xf32>
    %148 = arith.truncf %147 : vector<2x8xf32> to vector<2x8xbf16>
    %149 = vector.extract_strided_slice %8 {offsets = [16, 0], sizes = [8, 8], strides = [1, 1]} : vector<64x8xbf16> to vector<8x8xbf16>
    %cst_45 = arith.constant dense<0.000000e+00> : vector<2x8xf32>
    %150 = tpu.matmul %148, %149, %cst_45 {dimension_numbers = #tpu.dot_dimension_numbers<[1], [0], [0], [1], [0, 0, 1, 1], [], []>} : vector<2x8xbf16>, vector<8x8xbf16>, vector<2x8xf32> -> vector<2x8xf32>
    %151 = arith.addf %116, %150 : vector<2x8xf32>
    %152 = vector.extract_strided_slice %27 {offsets = [3, 0], sizes = [1, 32], strides = [1, 1]} : vector<8x32xf32> to vector<1x32xf32>
    %153 = vector.extract_strided_slice %43 {offsets = [3, 0], sizes = [1, 32], strides = [1, 1]} : vector<8x32xf32> to vector<1x32xf32>
    %154 = tpu.concatenate %152, %153 in 0 : vector<1x32xf32>, vector<1x32xf32> -> vector<2x32xf32>
    %155 = arith.truncf %147 : vector<2x8xf32> to vector<2x8xbf16>
    %cst_46 = arith.constant dense<0.000000e+00> : vector<2x32xf32>
    %156 = tpu.matmul %155, %6, %cst_46 {dimension_numbers = #tpu.dot_dimension_numbers<[1], [0], [0], [1], [0, 0, 1, 1], [], []>} : vector<2x8xbf16>, vector<8x32xbf16>, vector<2x32xf32> -> vector<2x32xf32>
    %157 = arith.addf %154, %156 : vector<2x32xf32>
    %158 = vector.extract_strided_slice %157 {offsets = [0, 0], sizes = [2, 8], strides = [1, 1]} : vector<2x32xf32> to vector<2x8xf32>
    %159 = arith.negf %158 : vector<2x8xf32>
    %160 = math.exp %159 : vector<2x8xf32>
    %cst_47 = arith.constant 1.000000e+00 : f32
    %161 = vector.broadcast %cst_47 : f32 to vector<2x8xf32>
    %162 = arith.addf %161, %160 : vector<2x8xf32>
    %163 = arith.divf %161, %162 : vector<2x8xf32>
    %164 = vector.extract_strided_slice %157 {offsets = [0, 8], sizes = [2, 8], strides = [1, 1]} : vector<2x32xf32> to vector<2x8xf32>
    %165 = arith.negf %164 : vector<2x8xf32>
    %166 = math.exp %165 : vector<2x8xf32>
    %cst_48 = arith.constant 1.000000e+00 : f32
    %167 = vector.broadcast %cst_48 : f32 to vector<2x8xf32>
    %168 = arith.addf %167, %166 : vector<2x8xf32>
    %169 = arith.divf %167, %168 : vector<2x8xf32>
    %170 = vector.extract_strided_slice %157 {offsets = [0, 16], sizes = [2, 8], strides = [1, 1]} : vector<2x32xf32> to vector<2x8xf32>
    %171 = math.tanh %170 : vector<2x8xf32>
    %172 = vector.extract_strided_slice %157 {offsets = [0, 24], sizes = [2, 8], strides = [1, 1]} : vector<2x32xf32> to vector<2x8xf32>
    %173 = arith.negf %172 : vector<2x8xf32>
    %174 = math.exp %173 : vector<2x8xf32>
    %cst_49 = arith.constant 1.000000e+00 : f32
    %175 = vector.broadcast %cst_49 : f32 to vector<2x8xf32>
    %176 = arith.addf %175, %174 : vector<2x8xf32>
    %177 = arith.divf %175, %176 : vector<2x8xf32>
    %178 = arith.mulf %169, %145 : vector<2x8xf32>
    %179 = arith.mulf %163, %171 : vector<2x8xf32>
    %180 = arith.addf %178, %179 : vector<2x8xf32>
    %181 = math.tanh %180 : vector<2x8xf32>
    %182 = arith.mulf %177, %181 : vector<2x8xf32>
    %183 = arith.truncf %182 : vector<2x8xf32> to vector<2x8xbf16>
    %184 = vector.extract_strided_slice %8 {offsets = [24, 0], sizes = [8, 8], strides = [1, 1]} : vector<64x8xbf16> to vector<8x8xbf16>
    %cst_50 = arith.constant dense<0.000000e+00> : vector<2x8xf32>
    %185 = tpu.matmul %183, %184, %cst_50 {dimension_numbers = #tpu.dot_dimension_numbers<[1], [0], [0], [1], [0, 0, 1, 1], [], []>} : vector<2x8xbf16>, vector<8x8xbf16>, vector<2x8xf32> -> vector<2x8xf32>
    %186 = arith.addf %151, %185 : vector<2x8xf32>
    %187 = vector.extract_strided_slice %27 {offsets = [4, 0], sizes = [1, 32], strides = [1, 1]} : vector<8x32xf32> to vector<1x32xf32>
    %188 = vector.extract_strided_slice %43 {offsets = [4, 0], sizes = [1, 32], strides = [1, 1]} : vector<8x32xf32> to vector<1x32xf32>
    %189 = tpu.concatenate %187, %188 in 0 : vector<1x32xf32>, vector<1x32xf32> -> vector<2x32xf32>
    %190 = arith.truncf %182 : vector<2x8xf32> to vector<2x8xbf16>
    %cst_51 = arith.constant dense<0.000000e+00> : vector<2x32xf32>
    %191 = tpu.matmul %190, %6, %cst_51 {dimension_numbers = #tpu.dot_dimension_numbers<[1], [0], [0], [1], [0, 0, 1, 1], [], []>} : vector<2x8xbf16>, vector<8x32xbf16>, vector<2x32xf32> -> vector<2x32xf32>
    %192 = arith.addf %189, %191 : vector<2x32xf32>
    %193 = vector.extract_strided_slice %192 {offsets = [0, 0], sizes = [2, 8], strides = [1, 1]} : vector<2x32xf32> to vector<2x8xf32>
    %194 = arith.negf %193 : vector<2x8xf32>
    %195 = math.exp %194 : vector<2x8xf32>
    %cst_52 = arith.constant 1.000000e+00 : f32
    %196 = vector.broadcast %cst_52 : f32 to vector<2x8xf32>
    %197 = arith.addf %196, %195 : vector<2x8xf32>
    %198 = arith.divf %196, %197 : vector<2x8xf32>
    %199 = vector.extract_strided_slice %192 {offsets = [0, 8], sizes = [2, 8], strides = [1, 1]} : vector<2x32xf32> to vector<2x8xf32>
    %200 = arith.negf %199 : vector<2x8xf32>
    %201 = math.exp %200 : vector<2x8xf32>
    %cst_53 = arith.constant 1.000000e+00 : f32
    %202 = vector.broadcast %cst_53 : f32 to vector<2x8xf32>
    %203 = arith.addf %202, %201 : vector<2x8xf32>
    %204 = arith.divf %202, %203 : vector<2x8xf32>
    %205 = vector.extract_strided_slice %192 {offsets = [0, 16], sizes = [2, 8], strides = [1, 1]} : vector<2x32xf32> to vector<2x8xf32>
    %206 = math.tanh %205 : vector<2x8xf32>
    %207 = vector.extract_strided_slice %192 {offsets = [0, 24], sizes = [2, 8], strides = [1, 1]} : vector<2x32xf32> to vector<2x8xf32>
    %208 = arith.negf %207 : vector<2x8xf32>
    %209 = math.exp %208 : vector<2x8xf32>
    %cst_54 = arith.constant 1.000000e+00 : f32
    %210 = vector.broadcast %cst_54 : f32 to vector<2x8xf32>
    %211 = arith.addf %210, %209 : vector<2x8xf32>
    %212 = arith.divf %210, %211 : vector<2x8xf32>
    %213 = arith.mulf %204, %180 : vector<2x8xf32>
    %214 = arith.mulf %198, %206 : vector<2x8xf32>
    %215 = arith.addf %213, %214 : vector<2x8xf32>
    %216 = math.tanh %215 : vector<2x8xf32>
    %217 = arith.mulf %212, %216 : vector<2x8xf32>
    %218 = arith.truncf %217 : vector<2x8xf32> to vector<2x8xbf16>
    %219 = vector.extract_strided_slice %8 {offsets = [32, 0], sizes = [8, 8], strides = [1, 1]} : vector<64x8xbf16> to vector<8x8xbf16>
    %cst_55 = arith.constant dense<0.000000e+00> : vector<2x8xf32>
    %220 = tpu.matmul %218, %219, %cst_55 {dimension_numbers = #tpu.dot_dimension_numbers<[1], [0], [0], [1], [0, 0, 1, 1], [], []>} : vector<2x8xbf16>, vector<8x8xbf16>, vector<2x8xf32> -> vector<2x8xf32>
    %221 = arith.addf %186, %220 : vector<2x8xf32>
    %222 = vector.extract_strided_slice %27 {offsets = [5, 0], sizes = [1, 32], strides = [1, 1]} : vector<8x32xf32> to vector<1x32xf32>
    %223 = vector.extract_strided_slice %43 {offsets = [5, 0], sizes = [1, 32], strides = [1, 1]} : vector<8x32xf32> to vector<1x32xf32>
    %224 = tpu.concatenate %222, %223 in 0 : vector<1x32xf32>, vector<1x32xf32> -> vector<2x32xf32>
    %225 = arith.truncf %217 : vector<2x8xf32> to vector<2x8xbf16>
    %cst_56 = arith.constant dense<0.000000e+00> : vector<2x32xf32>
    %226 = tpu.matmul %225, %6, %cst_56 {dimension_numbers = #tpu.dot_dimension_numbers<[1], [0], [0], [1], [0, 0, 1, 1], [], []>} : vector<2x8xbf16>, vector<8x32xbf16>, vector<2x32xf32> -> vector<2x32xf32>
    %227 = arith.addf %224, %226 : vector<2x32xf32>
    %228 = vector.extract_strided_slice %227 {offsets = [0, 0], sizes = [2, 8], strides = [1, 1]} : vector<2x32xf32> to vector<2x8xf32>
    %229 = arith.negf %228 : vector<2x8xf32>
    %230 = math.exp %229 : vector<2x8xf32>
    %cst_57 = arith.constant 1.000000e+00 : f32
    %231 = vector.broadcast %cst_57 : f32 to vector<2x8xf32>
    %232 = arith.addf %231, %230 : vector<2x8xf32>
    %233 = arith.divf %231, %232 : vector<2x8xf32>
    %234 = vector.extract_strided_slice %227 {offsets = [0, 8], sizes = [2, 8], strides = [1, 1]} : vector<2x32xf32> to vector<2x8xf32>
    %235 = arith.negf %234 : vector<2x8xf32>
    %236 = math.exp %235 : vector<2x8xf32>
    %cst_58 = arith.constant 1.000000e+00 : f32
    %237 = vector.broadcast %cst_58 : f32 to vector<2x8xf32>
    %238 = arith.addf %237, %236 : vector<2x8xf32>
    %239 = arith.divf %237, %238 : vector<2x8xf32>
    %240 = vector.extract_strided_slice %227 {offsets = [0, 16], sizes = [2, 8], strides = [1, 1]} : vector<2x32xf32> to vector<2x8xf32>
    %241 = math.tanh %240 : vector<2x8xf32>
    %242 = vector.extract_strided_slice %227 {offsets = [0, 24], sizes = [2, 8], strides = [1, 1]} : vector<2x32xf32> to vector<2x8xf32>
    %243 = arith.negf %242 : vector<2x8xf32>
    %244 = math.exp %243 : vector<2x8xf32>
    %cst_59 = arith.constant 1.000000e+00 : f32
    %245 = vector.broadcast %cst_59 : f32 to vector<2x8xf32>
    %246 = arith.addf %245, %244 : vector<2x8xf32>
    %247 = arith.divf %245, %246 : vector<2x8xf32>
    %248 = arith.mulf %239, %215 : vector<2x8xf32>
    %249 = arith.mulf %233, %241 : vector<2x8xf32>
    %250 = arith.addf %248, %249 : vector<2x8xf32>
    %251 = math.tanh %250 : vector<2x8xf32>
    %252 = arith.mulf %247, %251 : vector<2x8xf32>
    %253 = arith.truncf %252 : vector<2x8xf32> to vector<2x8xbf16>
    %254 = vector.extract_strided_slice %8 {offsets = [40, 0], sizes = [8, 8], strides = [1, 1]} : vector<64x8xbf16> to vector<8x8xbf16>
    %cst_60 = arith.constant dense<0.000000e+00> : vector<2x8xf32>
    %255 = tpu.matmul %253, %254, %cst_60 {dimension_numbers = #tpu.dot_dimension_numbers<[1], [0], [0], [1], [0, 0, 1, 1], [], []>} : vector<2x8xbf16>, vector<8x8xbf16>, vector<2x8xf32> -> vector<2x8xf32>
    %256 = arith.addf %221, %255 : vector<2x8xf32>
    %257 = vector.extract_strided_slice %27 {offsets = [6, 0], sizes = [1, 32], strides = [1, 1]} : vector<8x32xf32> to vector<1x32xf32>
    %258 = vector.extract_strided_slice %43 {offsets = [6, 0], sizes = [1, 32], strides = [1, 1]} : vector<8x32xf32> to vector<1x32xf32>
    %259 = tpu.concatenate %257, %258 in 0 : vector<1x32xf32>, vector<1x32xf32> -> vector<2x32xf32>
    %260 = arith.truncf %252 : vector<2x8xf32> to vector<2x8xbf16>
    %cst_61 = arith.constant dense<0.000000e+00> : vector<2x32xf32>
    %261 = tpu.matmul %260, %6, %cst_61 {dimension_numbers = #tpu.dot_dimension_numbers<[1], [0], [0], [1], [0, 0, 1, 1], [], []>} : vector<2x8xbf16>, vector<8x32xbf16>, vector<2x32xf32> -> vector<2x32xf32>
    %262 = arith.addf %259, %261 : vector<2x32xf32>
    %263 = vector.extract_strided_slice %262 {offsets = [0, 0], sizes = [2, 8], strides = [1, 1]} : vector<2x32xf32> to vector<2x8xf32>
    %264 = arith.negf %263 : vector<2x8xf32>
    %265 = math.exp %264 : vector<2x8xf32>
    %cst_62 = arith.constant 1.000000e+00 : f32
    %266 = vector.broadcast %cst_62 : f32 to vector<2x8xf32>
    %267 = arith.addf %266, %265 : vector<2x8xf32>
    %268 = arith.divf %266, %267 : vector<2x8xf32>
    %269 = vector.extract_strided_slice %262 {offsets = [0, 8], sizes = [2, 8], strides = [1, 1]} : vector<2x32xf32> to vector<2x8xf32>
    %270 = arith.negf %269 : vector<2x8xf32>
    %271 = math.exp %270 : vector<2x8xf32>
    %cst_63 = arith.constant 1.000000e+00 : f32
    %272 = vector.broadcast %cst_63 : f32 to vector<2x8xf32>
    %273 = arith.addf %272, %271 : vector<2x8xf32>
    %274 = arith.divf %272, %273 : vector<2x8xf32>
    %275 = vector.extract_strided_slice %262 {offsets = [0, 16], sizes = [2, 8], strides = [1, 1]} : vector<2x32xf32> to vector<2x8xf32>
    %276 = math.tanh %275 : vector<2x8xf32>
    %277 = vector.extract_strided_slice %262 {offsets = [0, 24], sizes = [2, 8], strides = [1, 1]} : vector<2x32xf32> to vector<2x8xf32>
    %278 = arith.negf %277 : vector<2x8xf32>
    %279 = math.exp %278 : vector<2x8xf32>
    %cst_64 = arith.constant 1.000000e+00 : f32
    %280 = vector.broadcast %cst_64 : f32 to vector<2x8xf32>
    %281 = arith.addf %280, %279 : vector<2x8xf32>
    %282 = arith.divf %280, %281 : vector<2x8xf32>
    %283 = arith.mulf %274, %250 : vector<2x8xf32>
    %284 = arith.mulf %268, %276 : vector<2x8xf32>
    %285 = arith.addf %283, %284 : vector<2x8xf32>
    %286 = math.tanh %285 : vector<2x8xf32>
    %287 = arith.mulf %282, %286 : vector<2x8xf32>
    %288 = arith.truncf %287 : vector<2x8xf32> to vector<2x8xbf16>
    %289 = vector.extract_strided_slice %8 {offsets = [48, 0], sizes = [8, 8], strides = [1, 1]} : vector<64x8xbf16> to vector<8x8xbf16>
    %cst_65 = arith.constant dense<0.000000e+00> : vector<2x8xf32>
    %290 = tpu.matmul %288, %289, %cst_65 {dimension_numbers = #tpu.dot_dimension_numbers<[1], [0], [0], [1], [0, 0, 1, 1], [], []>} : vector<2x8xbf16>, vector<8x8xbf16>, vector<2x8xf32> -> vector<2x8xf32>
    %291 = arith.addf %256, %290 : vector<2x8xf32>
    %292 = vector.extract_strided_slice %27 {offsets = [7, 0], sizes = [1, 32], strides = [1, 1]} : vector<8x32xf32> to vector<1x32xf32>
    %293 = vector.extract_strided_slice %43 {offsets = [7, 0], sizes = [1, 32], strides = [1, 1]} : vector<8x32xf32> to vector<1x32xf32>
    %294 = tpu.concatenate %292, %293 in 0 : vector<1x32xf32>, vector<1x32xf32> -> vector<2x32xf32>
    %295 = arith.truncf %287 : vector<2x8xf32> to vector<2x8xbf16>
    %cst_66 = arith.constant dense<0.000000e+00> : vector<2x32xf32>
    %296 = tpu.matmul %295, %6, %cst_66 {dimension_numbers = #tpu.dot_dimension_numbers<[1], [0], [0], [1], [0, 0, 1, 1], [], []>} : vector<2x8xbf16>, vector<8x32xbf16>, vector<2x32xf32> -> vector<2x32xf32>
    %297 = arith.addf %294, %296 : vector<2x32xf32>
    %298 = vector.extract_strided_slice %297 {offsets = [0, 0], sizes = [2, 8], strides = [1, 1]} : vector<2x32xf32> to vector<2x8xf32>
    %299 = arith.negf %298 : vector<2x8xf32>
    %300 = math.exp %299 : vector<2x8xf32>
    %cst_67 = arith.constant 1.000000e+00 : f32
    %301 = vector.broadcast %cst_67 : f32 to vector<2x8xf32>
    %302 = arith.addf %301, %300 : vector<2x8xf32>
    %303 = arith.divf %301, %302 : vector<2x8xf32>
    %304 = vector.extract_strided_slice %297 {offsets = [0, 8], sizes = [2, 8], strides = [1, 1]} : vector<2x32xf32> to vector<2x8xf32>
    %305 = arith.negf %304 : vector<2x8xf32>
    %306 = math.exp %305 : vector<2x8xf32>
    %cst_68 = arith.constant 1.000000e+00 : f32
    %307 = vector.broadcast %cst_68 : f32 to vector<2x8xf32>
    %308 = arith.addf %307, %306 : vector<2x8xf32>
    %309 = arith.divf %307, %308 : vector<2x8xf32>
    %310 = vector.extract_strided_slice %297 {offsets = [0, 16], sizes = [2, 8], strides = [1, 1]} : vector<2x32xf32> to vector<2x8xf32>
    %311 = math.tanh %310 : vector<2x8xf32>
    %312 = vector.extract_strided_slice %297 {offsets = [0, 24], sizes = [2, 8], strides = [1, 1]} : vector<2x32xf32> to vector<2x8xf32>
    %313 = arith.negf %312 : vector<2x8xf32>
    %314 = math.exp %313 : vector<2x8xf32>
    %cst_69 = arith.constant 1.000000e+00 : f32
    %315 = vector.broadcast %cst_69 : f32 to vector<2x8xf32>
    %316 = arith.addf %315, %314 : vector<2x8xf32>
    %317 = arith.divf %315, %316 : vector<2x8xf32>
    %318 = arith.mulf %309, %285 : vector<2x8xf32>
    %319 = arith.mulf %303, %311 : vector<2x8xf32>
    %320 = arith.addf %318, %319 : vector<2x8xf32>
    %321 = math.tanh %320 : vector<2x8xf32>
    %322 = arith.mulf %317, %321 : vector<2x8xf32>
    %323 = arith.truncf %322 : vector<2x8xf32> to vector<2x8xbf16>
    %324 = vector.extract_strided_slice %8 {offsets = [56, 0], sizes = [8, 8], strides = [1, 1]} : vector<64x8xbf16> to vector<8x8xbf16>
    %cst_70 = arith.constant dense<0.000000e+00> : vector<2x8xf32>
    %325 = tpu.matmul %323, %324, %cst_70 {dimension_numbers = #tpu.dot_dimension_numbers<[1], [0], [0], [1], [0, 0, 1, 1], [], []>} : vector<2x8xbf16>, vector<8x8xbf16>, vector<2x8xf32> -> vector<2x8xf32>
    %326 = arith.addf %291, %325 : vector<2x8xf32>
    %327 = vector.broadcast %9 : vector<1x8xf32> to vector<2x8xf32>
    %328 = arith.addf %326, %327 : vector<2x8xf32>
    %cst_71 = arith.constant 0.000000e+00 : f32
    %329 = vector.broadcast %cst_71 : f32 to vector<2x8xf32>
    %330 = arith.maximumf %328, %329 : vector<2x8xf32>
    %331 = arith.truncf %330 : vector<2x8xf32> to vector<2x8xbf16>
    %cst_72 = arith.constant dense<0.000000e+00> : vector<2x8xf32>
    %332 = tpu.matmul %331, %10, %cst_72 {dimension_numbers = #tpu.dot_dimension_numbers<[1], [0], [0], [1], [0, 0, 1, 1], [], []>} : vector<2x8xbf16>, vector<8x8xbf16>, vector<2x8xf32> -> vector<2x8xf32>
    %333 = vector.broadcast %11 : vector<1x8xf32> to vector<2x8xf32>
    %334 = arith.addf %332, %333 : vector<2x8xf32>
    %cst_73 = arith.constant dense<0xFF800000> : vector<2xf32>
    %335 = vector.multi_reduction <maximumf>, %334, %cst_73 [1] : vector<2x8xf32> to vector<2xf32>
    %336 = vector.shape_cast %335 : vector<2xf32> to vector<2x1xf32>
    %337 = vector.broadcast %336 : vector<2x1xf32> to vector<2x8xf32>
    %338 = arith.subf %334, %337 : vector<2x8xf32>
    %339 = math.exp %338 : vector<2x8xf32>
    %cst_74 = arith.constant dense<0.000000e+00> : vector<2xf32>
    %340 = vector.multi_reduction <add>, %339, %cst_74 [1] : vector<2x8xf32> to vector<2xf32>
    %341 = vector.shape_cast %340 : vector<2xf32> to vector<2x1xf32>
    %342 = math.log %341 : vector<2x1xf32>
    %343 = arith.addf %336, %342 : vector<2x1xf32>
    %344 = vector.broadcast %343 : vector<2x1xf32> to vector<2x8xf32>
    %345 = arith.subf %334, %344 : vector<2x8xf32>
    %c0_75 = arith.constant 0 : index
    %c0_76 = arith.constant 0 : index
    %346 = vector.load %arg17[%c0_75, %c0_76] : memref<2x8xf32, #tpu.memory_space<vmem>>, vector<2x8xf32>
    tpu.vector_store %arg17[%c0_75, %c0_76], %345 {strides = array<i32>} : memref<2x8xf32, #tpu.memory_space<vmem>>, vector<2x8xf32>,
    %c0_77 = arith.constant 0 : index
    %c0_78 = arith.constant 0 : index
    %347 = vector.load %arg12[%c0_77, %c0_78] : memref<2x8xf32, #tpu.memory_space<vmem>>, vector<2x8xf32>
    %348 = arith.addf %345, %347 : vector<2x8xf32>
    %cst_79 = arith.constant 2.000000e+00 : f32
    %349 = vector.broadcast %cst_79 : f32 to vector<2x8xf32>
    %350 = arith.mulf %348, %349 : vector<2x8xf32>
    %cst_80 = arith.constant dense<0xFF800000> : vector<2xf32>
    %351 = vector.multi_reduction <maximumf>, %350, %cst_80 [1] : vector<2x8xf32> to vector<2xf32>
    %352 = vector.shape_cast %351 : vector<2xf32> to vector<2x1xf32>
    %353 = vector.broadcast %352 : vector<2x1xf32> to vector<2x8xf32>
    %354 = arith.subf %350, %353 : vector<2x8xf32>
    %355 = math.exp %354 : vector<2x8xf32>
    %cst_81 = arith.constant dense<0.000000e+00> : vector<2xf32>
    %356 = vector.multi_reduction <add>, %355, %cst_81 [1] : vector<2x8xf32> to vector<2xf32>
    %357 = vector.shape_cast %356 : vector<2xf32> to vector<2x1xf32>
    %358 = vector.broadcast %357 : vector<2x1xf32> to vector<2x8xf32>
    %359 = arith.divf %355, %358 : vector<2x8xf32>
    %c0_82 = arith.constant 0 : index
    %c0_83 = arith.constant 0 : index
    %360 = vector.load %arg13[%c0_82, %c0_83] : memref<8x16xf32, #tpu.memory_space<vmem>>, vector<8x16xf32>
    %cst_84 = arith.constant dense<0.000000e+00> : vector<8xf32>
    %361 = vector.multi_reduction <add>, %360, %cst_84 [1] : vector<8x16xf32> to vector<8xf32>
    %362 = vector.shape_cast %361 : vector<8xf32> to vector<8x1xf32>
    %363 = vector.broadcast %362 : vector<8x1xf32> to vector<8x16xf32>
    %364 = arith.divf %360, %363 : vector<8x16xf32>
    %365 = arith.truncf %359 : vector<2x8xf32> to vector<2x8xbf16>
    %366 = arith.truncf %364 : vector<8x16xf32> to vector<8x16xbf16>
    %cst_85 = arith.constant dense<0.000000e+00> : vector<2x16xf32>
    %367 = tpu.matmul %365, %366, %cst_85 {dimension_numbers = #tpu.dot_dimension_numbers<[1], [0], [0], [1], [0, 0, 1, 1], [], []>} : vector<2x8xbf16>, vector<8x16xbf16>, vector<2x16xf32> -> vector<2x16xf32>
    %c0_86 = arith.constant 0 : index
    %c0_87 = arith.constant 0 : index
    %368 = vector.load %arg15[%c0_86, %c0_87] : memref<2x16xf32, #tpu.memory_space<vmem>>, vector<2x16xf32>
    tpu.vector_store %arg15[%c0_86, %c0_87], %367 {strides = array<i32>} : memref<2x16xf32, #tpu.memory_space<vmem>>, vector<2x16xf32>,
    %c0_88 = arith.constant 0 : index
    %c0_89 = arith.constant 0 : index
    %369 = vector.load %arg14[%c0_88, %c0_89] : memref<2x8xf32, #tpu.memory_space<vmem>>, vector<2x8xf32>
    %cst_90 = arith.constant dense<0.000000e+00> : vector<2xf32>
    %370 = vector.multi_reduction <add>, %369, %cst_90 [1] : vector<2x8xf32> to vector<2xf32>
    %371 = vector.shape_cast %370 : vector<2xf32> to vector<2x1xf32>
    %372 = vector.broadcast %371 : vector<2x1xf32> to vector<2x8xf32>
    %373 = arith.divf %369, %372 : vector<2x8xf32>
    %c0_91 = arith.constant 0 : index
    %c0_92 = arith.constant 0 : index
    %374 = vector.load %arg16[%c0_91, %c0_92] : memref<2x8xf32, #tpu.memory_space<vmem>>, vector<2x8xf32>
    tpu.vector_store %arg16[%c0_91, %c0_92], %373 {strides = array<i32>} : memref<2x8xf32, #tpu.memory_space<vmem>>, vector<2x8xf32>,
    return
  }
}

</mosaic_0001>

<llo_original>
// kernel: tpu_custom_call.1
$region0: #{tpu_custom_call.1}
  #allocation0 [shape = 'u32[]', space=smem, size = 0x4, offset = 0x4, fixed_abs, tag = 'smem constant byte address 0x4 - core index']
  #allocation1 [shape = 'u32[144,128]{1,0:T(1,128)}', space=vmem, size = 0x12000, scoped, tag = 'internal scratch']
  %s0 = inlined_call_operand.vmem [shape: f32[2,16], index: 0, kind: input, shape index: {}]
  %s1 = inlined_call_operand.vmem [shape: f32[8,1], index: 1, kind: input, shape index: {}]
  %s2 = inlined_call_operand.vmem [shape: f32[8,1], index: 2, kind: input, shape index: {}]
  %s3 = inlined_call_operand.vmem [shape: bf16[8,8], index: 3, kind: input, shape index: {}]
  %s4 = inlined_call_operand.vmem [shape: f32[8,1], index: 4, kind: input, shape index: {}]
  %s5 = inlined_call_operand.vmem [shape: bf16[16,32], index: 5, kind: input, shape index: {}]
  %s6 = inlined_call_operand.vmem [shape: bf16[8,32], index: 6, kind: input, shape index: {}]
  %s7 = inlined_call_operand.vmem [shape: f32[1,32], index: 7, kind: input, shape index: {}]
  %s8 = inlined_call_operand.vmem [shape: bf16[64,8], index: 8, kind: input, shape index: {}]
  %s9 = inlined_call_operand.vmem [shape: f32[1,8], index: 9, kind: input, shape index: {}]
  %s10 = inlined_call_operand.vmem [shape: bf16[8,8], index: 10, kind: input, shape index: {}]
  %s11 = inlined_call_operand.vmem [shape: f32[1,8], index: 11, kind: input, shape index: {}]
  %s12 = inlined_call_operand.vmem [shape: f32[2,8], index: 12, kind: input, shape index: {}]
  %s13 = inlined_call_operand.vmem [shape: f32[8,16], index: 13, kind: input, shape index: {}]
  %s14 = inlined_call_operand.vmem [shape: f32[2,8], index: 14, kind: input, shape index: {}]
  %s15 = inlined_call_operand.hbm [shape: f32[2,16], index: 15, kind: output, shape index: {0}]
  %s16 = inlined_call_operand.hbm [shape: f32[2,8], index: 16, kind: output, shape index: {1}]
  %s17 = inlined_call_operand.hbm [shape: f32[2,8], index: 17, kind: output, shape index: {2}]
  %18 = xla_tuple %s15, %s16, %s17
  %s19 = sld [smem:[#allocation0]]
  $region86: #{tpu_custom_call.1} parent=0
    _
  %s21 = ssub.s32 1, %s19
  %s22 = scalar_select 0, %s21, %s19
  $region1: #{tpu_custom_call.1} parent=0
    #allocation2 [shape = 'u8[1024]{0}', space=vmem, size = 0x400, scoped, tag = 'output window, operand 0, single buffered']
    #allocation3 [shape = 's32[1]{0}', space=sflag, size = 0x4, scoped, tag = 'scoped memory for tpu_custom_call.1']
    #allocation4 [shape = 'u8[1024]{0}', space=vmem, size = 0x400, scoped, tag = 'output window, operand 1, single buffered']
    #allocation5 [shape = 's32[1]{0}', space=sflag, size = 0x4, scoped, tag = 'scoped memory for tpu_custom_call.1']
    #allocation6 [shape = 'u8[1024]{0}', space=vmem, size = 0x400, scoped, tag = 'output window, operand 2, single buffered']
    %23 = vsyncpa [#allocation3], 0
    %24 = vsyncpa [#allocation5], 0
    // Predicated region
    $region2: #{tpu_custom_call.1} parent=1 // pred_check
      _
    $region3: #{tpu_custom_call.1} parent=1 // pred_check_branch
      %26 = sbr.rel (0) target = $region5
    $region4: #{tpu_custom_call.1} parent=1 // pred_region
      _
    $region5: #{tpu_custom_call.1} parent=1 // pred_fallthru
      _
    // Predicated region
    $region6: #{tpu_custom_call.1} parent=1 // pred_check
      _
    $region7: #{tpu_custom_call.1} parent=1 // pred_check_branch
      %28 = sbr.rel (0) target = $region9
    $region8: #{tpu_custom_call.1} parent=1 // pred_region
      _
    $region9: #{tpu_custom_call.1} parent=1 // pred_fallthru
      _
    // Predicated region
    $region10: #{tpu_custom_call.1} parent=1 // pred_check
      _
    $region11: #{tpu_custom_call.1} parent=1 // pred_check_branch
      %30 = sbr.rel (0) target = $region13
    $region12: #{tpu_custom_call.1} parent=1 // pred_region
      _
    $region13: #{tpu_custom_call.1} parent=1 // pred_fallthru
      _
    // Predicated region
    $region14: #{tpu_custom_call.1} parent=1 // pred_check
      _
    $region15: #{tpu_custom_call.1} parent=1 // pred_check_branch
      %32 = sbr.rel (0) target = $region17
    $region16: #{tpu_custom_call.1} parent=1 // pred_region
      _
    $region17: #{tpu_custom_call.1} parent=1 // pred_fallthru
      _
    // Predicated region
    $region18: #{tpu_custom_call.1} parent=1 // pred_check
      _
    $region19: #{tpu_custom_call.1} parent=1 // pred_check_branch
      %34 = sbr.rel (0) target = $region21
    $region20: #{tpu_custom_call.1} parent=1 // pred_region
      _
    $region21: #{tpu_custom_call.1} parent=1 // pred_fallthru
      _
    // Predicated region
    $region22: #{tpu_custom_call.1} parent=1 // pred_check
      _
    $region23: #{tpu_custom_call.1} parent=1 // pred_check_branch
      %36 = sbr.rel (0) target = $region25
    $region24: #{tpu_custom_call.1} parent=1 // pred_region
      _
    $region25: #{tpu_custom_call.1} parent=1 // pred_fallthru
      _
    // Predicated region
    $region26: #{tpu_custom_call.1} parent=1 // pred_check
      _
    $region27: #{tpu_custom_call.1} parent=1 // pred_check_branch
      %38 = sbr.rel (0) target = $region29
    $region28: #{tpu_custom_call.1} parent=1 // pred_region
      _
    $region29: #{tpu_custom_call.1} parent=1 // pred_fallthru
      _
    // Predicated region
    $region30: #{tpu_custom_call.1} parent=1 // pred_check
      _
    $region31: #{tpu_custom_call.1} parent=1 // pred_check_branch
      %40 = sbr.rel (0) target = $region33
    $region32: #{tpu_custom_call.1} parent=1 // pred_region
      _
    $region33: #{tpu_custom_call.1} parent=1 // pred_fallthru
      _
    // Predicated region
    $region34: #{tpu_custom_call.1} parent=1 // pred_check
      _
    $region35: #{tpu_custom_call.1} parent=1 // pred_check_branch
      %42 = sbr.rel (0) target = $region37
    $region36: #{tpu_custom_call.1} parent=1 // pred_region
      _
    $region37: #{tpu_custom_call.1} parent=1 // pred_fallthru
      _
    // Predicated region
    $region38: #{tpu_custom_call.1} parent=1 // pred_check
      _
    $region39: #{tpu_custom_call.1} parent=1 // pred_check_branch
      %44 = sbr.rel (0) target = $region41
    $region40: #{tpu_custom_call.1} parent=1 // pred_region
      _
    $region41: #{tpu_custom_call.1} parent=1 // pred_fallthru
      _
    // Predicated region
    $region42: #{tpu_custom_call.1} parent=1 // pred_check
      _
    $region43: #{tpu_custom_call.1} parent=1 // pred_check_branch
      %46 = sbr.rel (0) target = $region45
    $region44: #{tpu_custom_call.1} parent=1 // pred_region
      _
    $region45: #{tpu_custom_call.1} parent=1 // pred_fallthru
      _
    // Predicated region
    $region46: #{tpu_custom_call.1} parent=1 // pred_check
      _
    $region47: #{tpu_custom_call.1} parent=1 // pred_check_branch
      %48 = sbr.rel (0) target = $region49
    $region48: #{tpu_custom_call.1} parent=1 // pred_region
      _
    $region49: #{tpu_custom_call.1} parent=1 // pred_fallthru
      _
    // Predicated region
    $region50: #{tpu_custom_call.1} parent=1 // pred_check
      _
    $region51: #{tpu_custom_call.1} parent=1 // pred_check_branch
      %50 = sbr.rel (0) target = $region53
    $region52: #{tpu_custom_call.1} parent=1 // pred_region
      _
    $region53: #{tpu_custom_call.1} parent=1 // pred_fallthru
      _
    // Predicated region
    $region54: #{tpu_custom_call.1} parent=1 // pred_check
      _
    $region55: #{tpu_custom_call.1} parent=1 // pred_check_branch
      %52 = sbr.rel (0) target = $region57
    $region56: #{tpu_custom_call.1} parent=1 // pred_region
      _
    $region57: #{tpu_custom_call.1} parent=1 // pred_fallthru
      _
    // Predicated region
    $region58: #{tpu_custom_call.1} parent=1 // pred_check
      _
    $region59: #{tpu_custom_call.1} parent=1 // pred_check_branch
      %54 = sbr.rel (0) target = $region61
    $region60: #{tpu_custom_call.1} parent=1 // pred_region
      _
    $region61: #{tpu_custom_call.1} parent=1 // pred_fallthru
      _
    %v56 = vld [vmem:[%s0] sm:$0x3]
    %v57 = vld [vmem:[%s1] sm:$0xff]
    %v58 = vld [vmem:[%s2] sm:$0xff]
    %v59 = vld [vmem:[%s3] sm:$0xf]
    %v60 = vld [vmem:[%s4] sm:$0xff]
    %v61 = vld [vmem:[%s5] sm:$0xf]
    %v62 = vld [vmem:[%s5 + $0x4] sm:$0xf]
    %v63 = vld [vmem:[%s6] sm:$0xf]
    %v64 = vld [vmem:[%s7] sm:$0x1]
    %v65 = vld [vmem:[%s8] sm:$0xf]
    %v66 = vld [vmem:[%s8 + $0x4] sm:$0xf]
    %v67 = vld [vmem:[%s8 + $0x8] sm:$0xf]
    %v68 = vld [vmem:[%s8 + $0xc] sm:$0xf]
    %v69 = vld [vmem:[%s8 + $0x10] sm:$0xf]
    %v70 = vld [vmem:[%s8 + $0x14] sm:$0xf]
    %v71 = vld [vmem:[%s8 + $0x18] sm:$0xf]
    %v72 = vld [vmem:[%s8 + $0x1c] sm:$0xf]
    %v73 = vld [vmem:[%s9] sm:$0x1]
    %v74 = vld [vmem:[%s10] sm:$0xf]
    %v75 = vld [vmem:[%s11] sm:$0x1]
    %77 = vset.pattern.permute.xlu0 0
    %78 = vperm.xlu0 %77, %v57
    %v79 = vpop.permute.xlu0 %78
    %v81 = vlaneseq
    %v82 = vshrl.u32 %v81, 7
    %v83 = vsub.s32 0, %v82
    %v84 = vrot.slane %v56, %v83
    %v85 = vmul.f32 %v79, %v84
    %87 = vset.pattern.permute.xlu0 0
    %88 = vperm.xlu0 %87, %v58
    %v89 = vpop.permute.xlu0 %88
    %v91 = vadd.f32 %v85, %v89
    %v92 = vmax.f32 %v91, 0.0
    %v93 = vpack.c.bf16 %v92, %v92
    %95 = vset.pattern.permute.xlu0 0
    %96 = vperm.xlu0 %95, %v60
    %v97 = vpop.permute.xlu0 %96
    %vm99 = vcmask 64512
    %v101 = vsel %vm99, %v59, 0
    %vm103 = vcmask 1043456
    %v105 = vsel %vm103, %v93, 0
    %107 = vmatprep.subr.bf16.mxu0 0
    %108 = vmatpush1.bf16.msra.mxu0 %v105
    %109 = vmatprep.subr.bf16.mxu0 0
    %110 = vmatpush1.bf16.msra.mxu0 0
    %111 = vmatprep.subr.bf16.mxu0 0
    %112 = vmatpush1.bf16.msra.mxu0 0
    %113 = vmatprep.subr.bf16.mxu0 0
    %114 = vmatpush1.bf16.msra.mxu0 0
    %115 = vmatprep.subr.bf16.mxu0 0
    %116 = vmatpush1.bf16.msra.mxu0 0
    %117 = vmatprep.subr.bf16.mxu0 0
    %118 = vmatpush1.bf16.msra.mxu0 0
    %119 = vmatprep.subr.bf16.mxu0 0
    %120 = vmatpush1.bf16.msra.mxu0 0
    %121 = vmatprep.subr.bf16.mxu0 0
    %122 = vmatpush1.bf16.msra.mxu0 0
    %123 = vmatprep.subr.bf16.mxu0 0
    %124 = vmatpush1.bf16.msra.mxu0 0
    %125 = vmatprep.subr.bf16.mxu0 0
    %126 = vmatpush1.bf16.msra.mxu0 0
    %127 = vmatprep.subr.bf16.mxu0 0
    %128 = vmatpush1.bf16.msra.mxu0 0
    %129 = vmatprep.subr.bf16.mxu0 0
    %130 = vmatpush1.bf16.msra.mxu0 0
    %131 = vmatprep.subr.bf16.mxu0 0
    %132 = vmatpush1.bf16.msra.mxu0 0
    %133 = vmatprep.subr.bf16.mxu0 0
    %134 = vmatpush1.bf16.msra.mxu0 0
    %135 = vmatprep.subr.bf16.mxu0 0
    %136 = vmatpush1.bf16.msra.mxu0 0
    %137 = vmatprep.subr.bf16.mxu0 0
    %138 = vmatpush1.bf16.msra.mxu0 0
    %139 = vmatprep.mubr.bf16.mxu0 0
    %140 = vmatmul.mubr.bf16.gmra.mrb[0].mxu0 %v101
    %v141 = vpop.f32.mrb[0].mxu0
    %v142 = vadd.f32 %v97, %v141
    %v143 = vpop.f32.mrb[0].mxu0
    %v144 = vpop.f32.mrb[0].mxu0
    %v145 = vpop.f32.mrb[0].mxu0
    %146 = vdwg.mxu0
    %v147 = vpack.c.bf16 %v142, %v142
    %v149 = vlaneseq
    %v150 = vshrl.u32 %v149, 7
    %v151 = vsub.s32 0, %v150
    %v152 = vrot.slane %v64, %v151
    %v156 = vunpack.c.l.b16 %v61
    %v157 = vunpack.c.l.b16 %v62
    %v158 = vpack.c.b16 %v157, %v156
    %vm160 = vcmask 130048
    %v162 = vsel %vm160, %v147, 0
    %164 = vmatprep.subr.bf16.mxu0 0
    %165 = vmatpush1.bf16.msra.mxu0 %v158
    %166 = vmatprep.subr.bf16.mxu0 0
    %167 = vmatpush1.bf16.msra.mxu0 0
    %168 = vmatprep.subr.bf16.mxu0 0
    %169 = vmatpush1.bf16.msra.mxu0 0
    %170 = vmatprep.subr.bf16.mxu0 0
    %171 = vmatpush1.bf16.msra.mxu0 0
    %172 = vmatprep.subr.bf16.mxu0 0
    %173 = vmatpush1.bf16.msra.mxu0 0
    %174 = vmatprep.subr.bf16.mxu0 0
    %175 = vmatpush1.bf16.msra.mxu0 0
    %176 = vmatprep.subr.bf16.mxu0 0
    %177 = vmatpush1.bf16.msra.mxu0 0
    %178 = vmatprep.subr.bf16.mxu0 0
    %179 = vmatpush1.bf16.msra.mxu0 0
    %180 = vmatprep.subr.bf16.mxu0 0
    %181 = vmatpush1.bf16.msra.mxu0 0
    %182 = vmatprep.subr.bf16.mxu0 0
    %183 = vmatpush1.bf16.msra.mxu0 0
    %184 = vmatprep.subr.bf16.mxu0 0
    %185 = vmatpush1.bf16.msra.mxu0 0
    %186 = vmatprep.subr.bf16.mxu0 0
    %187 = vmatpush1.bf16.msra.mxu0 0
    %188 = vmatprep.subr.bf16.mxu0 0
    %189 = vmatpush1.bf16.msra.mxu0 0
    %190 = vmatprep.subr.bf16.mxu0 0
    %191 = vmatpush1.bf16.msra.mxu0 0
    %192 = vmatprep.subr.bf16.mxu0 0
    %193 = vmatpush1.bf16.msra.mxu0 0
    %194 = vmatprep.subr.bf16.mxu0 0
    %195 = vmatpush1.bf16.msra.mxu0 0
    %196 = vmatprep.mubr.bf16.mxu0 0
    %197 = vmatmul.mubr.bf16.gmra.mrb[0].mxu0 %v162
    %v198 = vpop.f32.mrb[0].mxu0
    %v199 = vadd.f32 %v152, %v198
    %v200 = vpop.f32.mrb[0].mxu0
    %v201 = vpop.f32.mrb[0].mxu0
    %v202 = vpop.f32.mrb[0].mxu0
    %203 = vdwg.mxu0
    %v204 = vlaneseq
    %v205 = vshrl.u32 %v204, 7
    %v206 = vsub.s32 1, %v205
    %v207 = vrot.slane %v56, %v206
    %v208 = vmul.f32 %v79, %v207
    %v209 = vadd.f32 %v208, %v89
    %v210 = vmax.f32 %v209, 0.0
    %v211 = vpack.c.bf16 %v210, %v210
    %v213 = vsel %vm103, %v211, 0
    %215 = vmatprep.subr.bf16.mxu0 0
    %216 = vmatpush1.bf16.msra.mxu0 %v213
    %217 = vmatprep.subr.bf16.mxu0 0
    %218 = vmatpush1.bf16.msra.mxu0 0
    %219 = vmatprep.subr.bf16.mxu0 0
    %220 = vmatpush1.bf16.msra.mxu0 0
    %221 = vmatprep.subr.bf16.mxu0 0
    %222 = vmatpush1.bf16.msra.mxu0 0
    %223 = vmatprep.subr.bf16.mxu0 0
    %224 = vmatpush1.bf16.msra.mxu0 0
    %225 = vmatprep.subr.bf16.mxu0 0
    %226 = vmatpush1.bf16.msra.mxu0 0
    %227 = vmatprep.subr.bf16.mxu0 0
    %228 = vmatpush1.bf16.msra.mxu0 0
    %229 = vmatprep.subr.bf16.mxu0 0
    %230 = vmatpush1.bf16.msra.mxu0 0
    %231 = vmatprep.subr.bf16.mxu0 0
    %232 = vmatpush1.bf16.msra.mxu0 0
    %233 = vmatprep.subr.bf16.mxu0 0
    %234 = vmatpush1.bf16.msra.mxu0 0
    %235 = vmatprep.subr.bf16.mxu0 0
    %236 = vmatpush1.bf16.msra.mxu0 0
    %237 = vmatprep.subr.bf16.mxu0 0
    %238 = vmatpush1.bf16.msra.mxu0 0
    %239 = vmatprep.subr.bf16.mxu0 0
    %240 = vmatpush1.bf16.msra.mxu0 0
    %241 = vmatprep.subr.bf16.mxu0 0
    %242 = vmatpush1.bf16.msra.mxu0 0
    %243 = vmatprep.subr.bf16.mxu0 0
    %244 = vmatpush1.bf16.msra.mxu0 0
    %245 = vmatprep.subr.bf16.mxu0 0
    %246 = vmatpush1.bf16.msra.mxu0 0
    %247 = vmatprep.mubr.bf16.mxu0 0
    %248 = vmatmul.mubr.bf16.gmra.mrb[0].mxu0 %v101
    %v249 = vpop.f32.mrb[0].mxu0
    %v250 = vadd.f32 %v97, %v249
    %v251 = vpop.f32.mrb[0].mxu0
    %v252 = vpop.f32.mrb[0].mxu0
    %v253 = vpop.f32.mrb[0].mxu0
    %254 = vdwg.mxu0
    %v255 = vpack.c.bf16 %v250, %v250
    %v257 = vsel %vm160, %v255, 0
    %259 = vmatprep.subr.bf16.mxu0 0
    %260 = vmatpush1.bf16.msra.mxu0 %v158
    %261 = vmatprep.subr.bf16.mxu0 0
    %262 = vmatpush1.bf16.msra.mxu0 0
    %263 = vmatprep.subr.bf16.mxu0 0
    %264 = vmatpush1.bf16.msra.mxu0 0
    %265 = vmatprep.subr.bf16.mxu0 0
    %266 = vmatpush1.bf16.msra.mxu0 0
    %267 = vmatprep.subr.bf16.mxu0 0
    %268 = vmatpush1.bf16.msra.mxu0 0
    %269 = vmatprep.subr.bf16.mxu0 0
    %270 = vmatpush1.bf16.msra.mxu0 0
    %271 = vmatprep.subr.bf16.mxu0 0
    %272 = vmatpush1.bf16.msra.mxu0 0
    %273 = vmatprep.subr.bf16.mxu0 0
    %274 = vmatpush1.bf16.msra.mxu0 0
    %275 = vmatprep.subr.bf16.mxu0 0
    %276 = vmatpush1.bf16.msra.mxu0 0
    %277 = vmatprep.subr.bf16.mxu0 0
    %278 = vmatpush1.bf16.msra.mxu0 0
    %279 = vmatprep.subr.bf16.mxu0 0
    %280 = vmatpush1.bf16.msra.mxu0 0
    %281 = vmatprep.subr.bf16.mxu0 0
    %282 = vmatpush1.bf16.msra.mxu0 0
    %283 = vmatprep.subr.bf16.mxu0 0
    %284 = vmatpush1.bf16.msra.mxu0 0
    %285 = vmatprep.subr.bf16.mxu0 0
    %286 = vmatpush1.bf16.msra.mxu0 0
    %287 = vmatprep.subr.bf16.mxu0 0
    %288 = vmatpush1.bf16.msra.mxu0 0
    %289 = vmatprep.subr.bf16.mxu0 0
    %290 = vmatpush1.bf16.msra.mxu0 0
    %291 = vmatprep.mubr.bf16.mxu0 0
    %292 = vmatmul.mubr.bf16.gmra.mrb[0].mxu0 %v257
    %v293 = vpop.f32.mrb[0].mxu0
    %v294 = vadd.f32 %v152, %v293
    %v295 = vpop.f32.mrb[0].mxu0
    %v296 = vpop.f32.mrb[0].mxu0
    %v297 = vpop.f32.mrb[0].mxu0
    %298 = vdwg.mxu0
    %v300 = vrot.slane %v294, 7
    %vm302 = vcmask 1040384
    %v303 = vsel %vm302, %v199, %v300
    %v305 = vsel %vm99, 0, 0
    %v308 = vsel %vm103, %v63, 0
    %310 = vmatprep.subr.bf16.mxu0 0
    %311 = vmatpush1.bf16.msra.mxu0 %v308
    %312 = vmatprep.subr.bf16.mxu0 0
    %313 = vmatpush1.bf16.msra.mxu0 0
    %314 = vmatprep.subr.bf16.mxu0 0
    %315 = vmatpush1.bf16.msra.mxu0 0
    %316 = vmatprep.subr.bf16.mxu0 0
    %317 = vmatpush1.bf16.msra.mxu0 0
    %318 = vmatprep.subr.bf16.mxu0 0
    %319 = vmatpush1.bf16.msra.mxu0 0
    %320 = vmatprep.subr.bf16.mxu0 0
    %321 = vmatpush1.bf16.msra.mxu0 0
    %322 = vmatprep.subr.bf16.mxu0 0
    %323 = vmatpush1.bf16.msra.mxu0 0
    %324 = vmatprep.subr.bf16.mxu0 0
    %325 = vmatpush1.bf16.msra.mxu0 0
    %326 = vmatprep.subr.bf16.mxu0 0
    %327 = vmatpush1.bf16.msra.mxu0 0
    %328 = vmatprep.subr.bf16.mxu0 0
    %329 = vmatpush1.bf16.msra.mxu0 0
    %330 = vmatprep.subr.bf16.mxu0 0
    %331 = vmatpush1.bf16.msra.mxu0 0
    %332 = vmatprep.subr.bf16.mxu0 0
    %333 = vmatpush1.bf16.msra.mxu0 0
    %334 = vmatprep.subr.bf16.mxu0 0
    %335 = vmatpush1.bf16.msra.mxu0 0
    %336 = vmatprep.subr.bf16.mxu0 0
    %337 = vmatpush1.bf16.msra.mxu0 0
    %338 = vmatprep.subr.bf16.mxu0 0
    %339 = vmatpush1.bf16.msra.mxu0 0
    %340 = vmatprep.subr.bf16.mxu0 0
    %341 = vmatpush1.bf16.msra.mxu0 0
    %342 = vmatprep.mubr.bf16.mxu0 0
    %343 = vmatmul.mubr.bf16.gmra.mrb[0].mxu0 %v305
    %v344 = vpop.f32.mrb[0].mxu0
    %v345 = vadd.f32 0.0, %v344
    %v346 = vpop.f32.mrb[0].mxu0
    %v347 = vpop.f32.mrb[0].mxu0
    %v348 = vpop.f32.mrb[0].mxu0
    %349 = vdwg.mxu0
    %v350 = vadd.f32 %v303, %v345
    %v351 = vxor.u32 %v350, 2147483648
    %v352 = vmul.f32 %v351, 1.442695
    %v353 = vpow.pop %v352
    %v354 = vadd.f32 %v353, 1.0
    %v355 = vrcp.pop %v354
    %v356 = vmul.f32 1.0, %v355
    %v357 = vtanh.pop %v350
    %v358 = vmul.f32 %v356, 0.0
    %360 = vrot.lane.b32.xlu0 %v357, 112
    %v361 = vpop.permute.xlu0 %360
    %v363 = vmul.f32 %v356, %v361
    %365 = vrot.lane.b32.xlu0 %v363, 8
    %v366 = vpop.permute.xlu0 %365
    %v368 = vadd.f32 %v358, %v366
    %v369 = vtanh.pop %v368
    %371 = vrot.lane.b32.xlu0 %v369, 16
    %v372 = vpop.permute.xlu0 %371
    %v374 = vmul.f32 %v356, %v372
    %v375 = vpack.c.bf16 %v374, %v374
    %v377 = vrot.slane %v199, 1
    %v379 = vsel %vm302, %v377, %v294
    %381 = vrot.lane.b32.xlu0 %v375, 104
    %v382 = vpop.permute.xlu0 %381
    %v384 = vsel %vm99, %v382, 0
    %386 = vmatprep.subr.bf16.mxu0 0
    %387 = vmatpush1.bf16.msra.mxu0 %v308
    %388 = vmatprep.subr.bf16.mxu0 0
    %389 = vmatpush1.bf16.msra.mxu0 0
    %390 = vmatprep.subr.bf16.mxu0 0
    %391 = vmatpush1.bf16.msra.mxu0 0
    %392 = vmatprep.subr.bf16.mxu0 0
    %393 = vmatpush1.bf16.msra.mxu0 0
    %394 = vmatprep.subr.bf16.mxu0 0
    %395 = vmatpush1.bf16.msra.mxu0 0
    %396 = vmatprep.subr.bf16.mxu0 0
    %397 = vmatpush1.bf16.msra.mxu0 0
    %398 = vmatprep.subr.bf16.mxu0 0
    %399 = vmatpush1.bf16.msra.mxu0 0
    %400 = vmatprep.subr.bf16.mxu0 0
    %401 = vmatpush1.bf16.msra.mxu0 0
    %402 = vmatprep.subr.bf16.mxu0 0
    %403 = vmatpush1.bf16.msra.mxu0 0
    %404 = vmatprep.subr.bf16.mxu0 0
    %405 = vmatpush1.bf16.msra.mxu0 0
    %406 = vmatprep.subr.bf16.mxu0 0
    %407 = vmatpush1.bf16.msra.mxu0 0
    %408 = vmatprep.subr.bf16.mxu0 0
    %409 = vmatpush1.bf16.msra.mxu0 0
    %410 = vmatprep.subr.bf16.mxu0 0
    %411 = vmatpush1.bf16.msra.mxu0 0
    %412 = vmatprep.subr.bf16.mxu0 0
    %413 = vmatpush1.bf16.msra.mxu0 0
    %414 = vmatprep.subr.bf16.mxu0 0
    %415 = vmatpush1.bf16.msra.mxu0 0
    %416 = vmatprep.subr.bf16.mxu0 0
    %417 = vmatpush1.bf16.msra.mxu0 0
    %418 = vmatprep.mubr.bf16.mxu0 0
    %419 = vmatmul.mubr.bf16.gmra.mrb[0].mxu0 %v384
    %v420 = vpop.f32.mrb[0].mxu0
    %v421 = vadd.f32 0.0, %v420
    %v422 = vpop.f32.mrb[0].mxu0
    %v423 = vpop.f32.mrb[0].mxu0
    %v424 = vpop.f32.mrb[0].mxu0
    %425 = vdwg.mxu0
    %v426 = vadd.f32 %v379, %v421
    %v427 = vxor.u32 %v426, 2147483648
    %v428 = vmul.f32 %v427, 1.442695
    %v429 = vpow.pop %v428
    %v430 = vadd.f32 %v429, 1.0
    %v431 = vrcp.pop %v430
    %v432 = vmul.f32 1.0, %v431
    %v433 = vtanh.pop %v426
    %v434 = vmul.f32 %v432, %v368
    %436 = vrot.lane.b32.xlu0 %v433, 112
    %v437 = vpop.permute.xlu0 %436
    %v439 = vmul.f32 %v432, %v437
    %441 = vrot.lane.b32.xlu0 %v439, 8
    %v442 = vpop.permute.xlu0 %441
    %v444 = vadd.f32 %v434, %v442
    %v445 = vtanh.pop %v444
    %447 = vrot.lane.b32.xlu0 %v445, 16
    %v448 = vpop.permute.xlu0 %447
    %v450 = vmul.f32 %v432, %v448
    %v451 = vpack.c.bf16 %v450, %v450
    %453 = vrot.lane.b32.xlu0 %v451, 104
    %v454 = vpop.permute.xlu0 %453
    %v456 = vsel %vm99, %v454, 0
    %v459 = vsel %vm103, %v66, 0
    %461 = vmatprep.subr.bf16.mxu0 0
    %462 = vmatpush1.bf16.msra.mxu0 %v459
    %463 = vmatprep.subr.bf16.mxu0 0
    %464 = vmatpush1.bf16.msra.mxu0 0
    %465 = vmatprep.subr.bf16.mxu0 0
    %466 = vmatpush1.bf16.msra.mxu0 0
    %467 = vmatprep.subr.bf16.mxu0 0
    %468 = vmatpush1.bf16.msra.mxu0 0
    %469 = vmatprep.subr.bf16.mxu0 0
    %470 = vmatpush1.bf16.msra.mxu0 0
    %471 = vmatprep.subr.bf16.mxu0 0
    %472 = vmatpush1.bf16.msra.mxu0 0
    %473 = vmatprep.subr.bf16.mxu0 0
    %474 = vmatpush1.bf16.msra.mxu0 0
    %475 = vmatprep.subr.bf16.mxu0 0
    %476 = vmatpush1.bf16.msra.mxu0 0
    %477 = vmatprep.subr.bf16.mxu0 0
    %478 = vmatpush1.bf16.msra.mxu0 0
    %479 = vmatprep.subr.bf16.mxu0 0
    %480 = vmatpush1.bf16.msra.mxu0 0
    %481 = vmatprep.subr.bf16.mxu0 0
    %482 = vmatpush1.bf16.msra.mxu0 0
    %483 = vmatprep.subr.bf16.mxu0 0
    %484 = vmatpush1.bf16.msra.mxu0 0
    %485 = vmatprep.subr.bf16.mxu0 0
    %486 = vmatpush1.bf16.msra.mxu0 0
    %487 = vmatprep.subr.bf16.mxu0 0
    %488 = vmatpush1.bf16.msra.mxu0 0
    %489 = vmatprep.subr.bf16.mxu0 0
    %490 = vmatpush1.bf16.msra.mxu0 0
    %491 = vmatprep.subr.bf16.mxu0 0
    %492 = vmatpush1.bf16.msra.mxu0 0
    %493 = vmatprep.mubr.bf16.mxu0 0
    %494 = vmatmul.mubr.bf16.gmra.mrb[0].mxu0 %v456
    %v495 = vpop.f32.mrb[0].mxu0
    %v496 = vadd.f32 0.0, %v495
    %v497 = vpop.f32.mrb[0].mxu0
    %v498 = vpop.f32.mrb[0].mxu0
    %v499 = vpop.f32.mrb[0].mxu0
    %500 = vdwg.mxu0
    %v502 = vsel %vm103, %v65, 0
    %504 = vmatprep.subr.bf16.mxu0 0
    %505 = vmatpush1.bf16.msra.mxu0 %v502
    %506 = vmatprep.subr.bf16.mxu0 0
    %507 = vmatpush1.bf16.msra.mxu0 0
    %508 = vmatprep.subr.bf16.mxu0 0
    %509 = vmatpush1.bf16.msra.mxu0 0
    %510 = vmatprep.subr.bf16.mxu0 0
    %511 = vmatpush1.bf16.msra.mxu0 0
    %512 = vmatprep.subr.bf16.mxu0 0
    %513 = vmatpush1.bf16.msra.mxu0 0
    %514 = vmatprep.subr.bf16.mxu0 0
    %515 = vmatpush1.bf16.msra.mxu0 0
    %516 = vmatprep.subr.bf16.mxu0 0
    %517 = vmatpush1.bf16.msra.mxu0 0
    %518 = vmatprep.subr.bf16.mxu0 0
    %519 = vmatpush1.bf16.msra.mxu0 0
    %520 = vmatprep.subr.bf16.mxu0 0
    %521 = vmatpush1.bf16.msra.mxu0 0
    %522 = vmatprep.subr.bf16.mxu0 0
    %523 = vmatpush1.bf16.msra.mxu0 0
    %524 = vmatprep.subr.bf16.mxu0 0
    %525 = vmatpush1.bf16.msra.mxu0 0
    %526 = vmatprep.subr.bf16.mxu0 0
    %527 = vmatpush1.bf16.msra.mxu0 0
    %528 = vmatprep.subr.bf16.mxu0 0
    %529 = vmatpush1.bf16.msra.mxu0 0
    %530 = vmatprep.subr.bf16.mxu0 0
    %531 = vmatpush1.bf16.msra.mxu0 0
    %532 = vmatprep.subr.bf16.mxu0 0
    %533 = vmatpush1.bf16.msra.mxu0 0
    %534 = vmatprep.subr.bf16.mxu0 0
    %535 = vmatpush1.bf16.msra.mxu0 0
    %536 = vmatprep.mubr.bf16.mxu0 0
    %537 = vmatmul.mubr.bf16.gmra.mrb[0].mxu0 %v384
    %v538 = vpop.f32.mrb[0].mxu0
    %v539 = vadd.f32 %v496, %v538
    %v540 = vpop.f32.mrb[0].mxu0
    %v541 = vpop.f32.mrb[0].mxu0
    %v542 = vpop.f32.mrb[0].mxu0
    %543 = vdwg.mxu0
    %v544 = vrot.slane %v199, 2
    %v546 = vrot.slane %v294, 1
    %v548 = vsel %vm302, %v544, %v546
    %549 = vmatprep.subr.bf16.mxu0 0
    %550 = vmatpush1.bf16.msra.mxu0 %v308
    %551 = vmatprep.subr.bf16.mxu0 0
    %552 = vmatpush1.bf16.msra.mxu0 0
    %553 = vmatprep.subr.bf16.mxu0 0
    %554 = vmatpush1.bf16.msra.mxu0 0
    %555 = vmatprep.subr.bf16.mxu0 0
    %556 = vmatpush1.bf16.msra.mxu0 0
    %557 = vmatprep.subr.bf16.mxu0 0
    %558 = vmatpush1.bf16.msra.mxu0 0
    %559 = vmatprep.subr.bf16.mxu0 0
    %560 = vmatpush1.bf16.msra.mxu0 0
    %561 = vmatprep.subr.bf16.mxu0 0
    %562 = vmatpush1.bf16.msra.mxu0 0
    %563 = vmatprep.subr.bf16.mxu0 0
    %564 = vmatpush1.bf16.msra.mxu0 0
    %565 = vmatprep.subr.bf16.mxu0 0
    %566 = vmatpush1.bf16.msra.mxu0 0
    %567 = vmatprep.subr.bf16.mxu0 0
    %568 = vmatpush1.bf16.msra.mxu0 0
    %569 = vmatprep.subr.bf16.mxu0 0
    %570 = vmatpush1.bf16.msra.mxu0 0
    %571 = vmatprep.subr.bf16.mxu0 0
    %572 = vmatpush1.bf16.msra.mxu0 0
    %573 = vmatprep.subr.bf16.mxu0 0
    %574 = vmatpush1.bf16.msra.mxu0 0
    %575 = vmatprep.subr.bf16.mxu0 0
    %576 = vmatpush1.bf16.msra.mxu0 0
    %577 = vmatprep.subr.bf16.mxu0 0
    %578 = vmatpush1.bf16.msra.mxu0 0
    %579 = vmatprep.subr.bf16.mxu0 0
    %580 = vmatpush1.bf16.msra.mxu0 0
    %581 = vmatprep.mubr.bf16.mxu0 0
    %582 = vmatmul.mubr.bf16.gmra.mrb[0].mxu0 %v456
    %v583 = vpop.f32.mrb[0].mxu0
    %v584 = vadd.f32 0.0, %v583
    %v585 = vpop.f32.mrb[0].mxu0
    %v586 = vpop.f32.mrb[0].mxu0
    %v587 = vpop.f32.mrb[0].mxu0
    %588 = vdwg.mxu0
    %v589 = vadd.f32 %v548, %v584
    %v590 = vxor.u32 %v589, 2147483648
    %v591 = vmul.f32 %v590, 1.442695
    %v592 = vpow.pop %v591
    %v593 = vadd.f32 %v592, 1.0
    %v594 = vrcp.pop %v593
    %v595 = vmul.f32 1.0, %v594
    %v596 = vtanh.pop %v589
    %v597 = vmul.f32 %v595, %v444
    %599 = vrot.lane.b32.xlu0 %v596, 112
    %v600 = vpop.permute.xlu0 %599
    %v602 = vmul.f32 %v595, %v600
    %604 = vrot.lane.b32.xlu0 %v602, 8
    %v605 = vpop.permute.xlu0 %604
    %v607 = vadd.f32 %v597, %v605
    %v608 = vtanh.pop %v607
    %610 = vrot.lane.b32.xlu0 %v608, 16
    %v611 = vpop.permute.xlu0 %610
    %v613 = vmul.f32 %v595, %v611
    %v614 = vpack.c.bf16 %v613, %v613
    %616 = vrot.lane.b32.xlu0 %v614, 104
    %v617 = vpop.permute.xlu0 %616
    %v619 = vsel %vm99, %v617, 0
    %v622 = vsel %vm103, %v67, 0
    %624 = vmatprep.subr.bf16.mxu0 0
    %625 = vmatpush1.bf16.msra.mxu0 %v622
    %626 = vmatprep.subr.bf16.mxu0 0
    %627 = vmatpush1.bf16.msra.mxu0 0
    %628 = vmatprep.subr.bf16.mxu0 0
    %629 = vmatpush1.bf16.msra.mxu0 0
    %630 = vmatprep.subr.bf16.mxu0 0
    %631 = vmatpush1.bf16.msra.mxu0 0
    %632 = vmatprep.subr.bf16.mxu0 0
    %633 = vmatpush1.bf16.msra.mxu0 0
    %634 = vmatprep.subr.bf16.mxu0 0
    %635 = vmatpush1.bf16.msra.mxu0 0
    %636 = vmatprep.subr.bf16.mxu0 0
    %637 = vmatpush1.bf16.msra.mxu0 0
    %638 = vmatprep.subr.bf16.mxu0 0
    %639 = vmatpush1.bf16.msra.mxu0 0
    %640 = vmatprep.subr.bf16.mxu0 0
    %641 = vmatpush1.bf16.msra.mxu0 0
    %642 = vmatprep.subr.bf16.mxu0 0
    %643 = vmatpush1.bf16.msra.mxu0 0
    %644 = vmatprep.subr.bf16.mxu0 0
    %645 = vmatpush1.bf16.msra.mxu0 0
    %646 = vmatprep.subr.bf16.mxu0 0
    %647 = vmatpush1.bf16.msra.mxu0 0
    %648 = vmatprep.subr.bf16.mxu0 0
    %649 = vmatpush1.bf16.msra.mxu0 0
    %650 = vmatprep.subr.bf16.mxu0 0
    %651 = vmatpush1.bf16.msra.mxu0 0
    %652 = vmatprep.subr.bf16.mxu0 0
    %653 = vmatpush1.bf16.msra.mxu0 0
    %654 = vmatprep.subr.bf16.mxu0 0
    %655 = vmatpush1.bf16.msra.mxu0 0
    %656 = vmatprep.mubr.bf16.mxu0 0
    %657 = vmatmul.mubr.bf16.gmra.mrb[0].mxu0 %v619
    %v658 = vpop.f32.mrb[0].mxu0
    %v659 = vadd.f32 0.0, %v658
    %v660 = vpop.f32.mrb[0].mxu0
    %v661 = vpop.f32.mrb[0].mxu0
    %v662 = vpop.f32.mrb[0].mxu0
    %663 = vdwg.mxu0
    %v664 = vadd.f32 %v539, %v659
    %v665 = vrot.slane %v199, 3
    %v667 = vrot.slane %v294, 2
    %v669 = vsel %vm302, %v665, %v667
    %670 = vmatprep.subr.bf16.mxu0 0
    %671 = vmatpush1.bf16.msra.mxu0 %v308
    %672 = vmatprep.subr.bf16.mxu0 0
    %673 = vmatpush1.bf16.msra.mxu0 0
    %674 = vmatprep.subr.bf16.mxu0 0
    %675 = vmatpush1.bf16.msra.mxu0 0
    %676 = vmatprep.subr.bf16.mxu0 0
    %677 = vmatpush1.bf16.msra.mxu0 0
    %678 = vmatprep.subr.bf16.mxu0 0
    %679 = vmatpush1.bf16.msra.mxu0 0
    %680 = vmatprep.subr.bf16.mxu0 0
    %681 = vmatpush1.bf16.msra.mxu0 0
    %682 = vmatprep.subr.bf16.mxu0 0
    %683 = vmatpush1.bf16.msra.mxu0 0
    %684 = vmatprep.subr.bf16.mxu0 0
    %685 = vmatpush1.bf16.msra.mxu0 0
    %686 = vmatprep.subr.bf16.mxu0 0
    %687 = vmatpush1.bf16.msra.mxu0 0
    %688 = vmatprep.subr.bf16.mxu0 0
    %689 = vmatpush1.bf16.msra.mxu0 0
    %690 = vmatprep.subr.bf16.mxu0 0
    %691 = vmatpush1.bf16.msra.mxu0 0
    %692 = vmatprep.subr.bf16.mxu0 0
    %693 = vmatpush1.bf16.msra.mxu0 0
    %694 = vmatprep.subr.bf16.mxu0 0
    %695 = vmatpush1.bf16.msra.mxu0 0
    %696 = vmatprep.subr.bf16.mxu0 0
    %697 = vmatpush1.bf16.msra.mxu0 0
    %698 = vmatprep.subr.bf16.mxu0 0
    %699 = vmatpush1.bf16.msra.mxu0 0
    %700 = vmatprep.subr.bf16.mxu0 0
    %701 = vmatpush1.bf16.msra.mxu0 0
    %702 = vmatprep.mubr.bf16.mxu0 0
    %703 = vmatmul.mubr.bf16.gmra.mrb[0].mxu0 %v619
    %v704 = vpop.f32.mrb[0].mxu0
    %v705 = vadd.f32 0.0, %v704
    %v706 = vpop.f32.mrb[0].mxu0
    %v707 = vpop.f32.mrb[0].mxu0
    %v708 = vpop.f32.mrb[0].mxu0
    %709 = vdwg.mxu0
    %v710 = vadd.f32 %v669, %v705
    %v711 = vxor.u32 %v710, 2147483648
    %v712 = vmul.f32 %v711, 1.442695
    %v713 = vpow.pop %v712
    %v714 = vadd.f32 %v713, 1.0
    %v715 = vrcp.pop %v714
    %v716 = vmul.f32 1.0, %v715
    %v717 = vtanh.pop %v710
    %v718 = vmul.f32 %v716, %v607
    %720 = vrot.lane.b32.xlu0 %v717, 112
    %v721 = vpop.permute.xlu0 %720
    %v723 = vmul.f32 %v716, %v721
    %725 = vrot.lane.b32.xlu0 %v723, 8
    %v726 = vpop.permute.xlu0 %725
    %v728 = vadd.f32 %v718, %v726
    %v729 = vtanh.pop %v728
    %731 = vrot.lane.b32.xlu0 %v729, 16
    %v732 = vpop.permute.xlu0 %731
    %v734 = vmul.f32 %v716, %v732
    %v735 = vpack.c.bf16 %v734, %v734
    %737 = vrot.lane.b32.xlu0 %v735, 104
    %v738 = vpop.permute.xlu0 %737
    %v740 = vsel %vm99, %v738, 0
    %v743 = vsel %vm103, %v68, 0
    %745 = vmatprep.subr.bf16.mxu0 0
    %746 = vmatpush1.bf16.msra.mxu0 %v743
    %747 = vmatprep.subr.bf16.mxu0 0
    %748 = vmatpush1.bf16.msra.mxu0 0
    %749 = vmatprep.subr.bf16.mxu0 0
    %750 = vmatpush1.bf16.msra.mxu0 0
    %751 = vmatprep.subr.bf16.mxu0 0
    %752 = vmatpush1.bf16.msra.mxu0 0
    %753 = vmatprep.subr.bf16.mxu0 0
    %754 = vmatpush1.bf16.msra.mxu0 0
    %755 = vmatprep.subr.bf16.mxu0 0
    %756 = vmatpush1.bf16.msra.mxu0 0
    %757 = vmatprep.subr.bf16.mxu0 0
    %758 = vmatpush1.bf16.msra.mxu0 0
    %759 = vmatprep.subr.bf16.mxu0 0
    %760 = vmatpush1.bf16.msra.mxu0 0
    %761 = vmatprep.subr.bf16.mxu0 0
    %762 = vmatpush1.bf16.msra.mxu0 0
    %763 = vmatprep.subr.bf16.mxu0 0
    %764 = vmatpush1.bf16.msra.mxu0 0
    %765 = vmatprep.subr.bf16.mxu0 0
    %766 = vmatpush1.bf16.msra.mxu0 0
    %767 = vmatprep.subr.bf16.mxu0 0
    %768 = vmatpush1.bf16.msra.mxu0 0
    %769 = vmatprep.subr.bf16.mxu0 0
    %770 = vmatpush1.bf16.msra.mxu0 0
    %771 = vmatprep.subr.bf16.mxu0 0
    %772 = vmatpush1.bf16.msra.mxu0 0
    %773 = vmatprep.subr.bf16.mxu0 0
    %774 = vmatpush1.bf16.msra.mxu0 0
    %775 = vmatprep.subr.bf16.mxu0 0
    %776 = vmatpush1.bf16.msra.mxu0 0
    %777 = vmatprep.mubr.bf16.mxu0 0
    %778 = vmatmul.mubr.bf16.gmra.mrb[0].mxu0 %v740
    %v779 = vpop.f32.mrb[0].mxu0
    %v780 = vadd.f32 0.0, %v779
    %v781 = vpop.f32.mrb[0].mxu0
    %v782 = vpop.f32.mrb[0].mxu0
    %v783 = vpop.f32.mrb[0].mxu0
    %784 = vdwg.mxu0
    %v785 = vadd.f32 %v664, %v780
    %v786 = vrot.slane %v199, 4
    %v788 = vrot.slane %v294, 3
    %v790 = vsel %vm302, %v786, %v788
    %791 = vmatprep.subr.bf16.mxu0 0
    %792 = vmatpush1.bf16.msra.mxu0 %v308
    %793 = vmatprep.subr.bf16.mxu0 0
    %794 = vmatpush1.bf16.msra.mxu0 0
    %795 = vmatprep.subr.bf16.mxu0 0
    %796 = vmatpush1.bf16.msra.mxu0 0
    %797 = vmatprep.subr.bf16.mxu0 0
    %798 = vmatpush1.bf16.msra.mxu0 0
    %799 = vmatprep.subr.bf16.mxu0 0
    %800 = vmatpush1.bf16.msra.mxu0 0
    %801 = vmatprep.subr.bf16.mxu0 0
    %802 = vmatpush1.bf16.msra.mxu0 0
    %803 = vmatprep.subr.bf16.mxu0 0
    %804 = vmatpush1.bf16.msra.mxu0 0
    %805 = vmatprep.subr.bf16.mxu0 0
    %806 = vmatpush1.bf16.msra.mxu0 0
    %807 = vmatprep.subr.bf16.mxu0 0
    %808 = vmatpush1.bf16.msra.mxu0 0
    %809 = vmatprep.subr.bf16.mxu0 0
    %810 = vmatpush1.bf16.msra.mxu0 0
    %811 = vmatprep.subr.bf16.mxu0 0
    %812 = vmatpush1.bf16.msra.mxu0 0
    %813 = vmatprep.subr.bf16.mxu0 0
    %814 = vmatpush1.bf16.msra.mxu0 0
    %815 = vmatprep.subr.bf16.mxu0 0
    %816 = vmatpush1.bf16.msra.mxu0 0
    %817 = vmatprep.subr.bf16.mxu0 0
    %818 = vmatpush1.bf16.msra.mxu0 0
    %819 = vmatprep.subr.bf16.mxu0 0
    %820 = vmatpush1.bf16.msra.mxu0 0
    %821 = vmatprep.subr.bf16.mxu0 0
    %822 = vmatpush1.bf16.msra.mxu0 0
    %823 = vmatprep.mubr.bf16.mxu0 0
    %824 = vmatmul.mubr.bf16.gmra.mrb[0].mxu0 %v740
    %v825 = vpop.f32.mrb[0].mxu0
    %v826 = vadd.f32 0.0, %v825
    %v827 = vpop.f32.mrb[0].mxu0
    %v828 = vpop.f32.mrb[0].mxu0
    %v829 = vpop.f32.mrb[0].mxu0
    %830 = vdwg.mxu0
    %v831 = vadd.f32 %v790, %v826
    %v832 = vxor.u32 %v831, 2147483648
    %v833 = vmul.f32 %v832, 1.442695
    %v834 = vpow.pop %v833
    %v835 = vadd.f32 %v834, 1.0
    %v836 = vrcp.pop %v835
    %v837 = vmul.f32 1.0, %v836
    %v838 = vtanh.pop %v831
    %v839 = vmul.f32 %v837, %v728
    %841 = vrot.lane.b32.xlu0 %v838, 112
    %v842 = vpop.permute.xlu0 %841
    %v844 = vmul.f32 %v837, %v842
    %846 = vrot.lane.b32.xlu0 %v844, 8
    %v847 = vpop.permute.xlu0 %846
    %v849 = vadd.f32 %v839, %v847
    %v850 = vtanh.pop %v849
    %852 = vrot.lane.b32.xlu0 %v850, 16
    %v853 = vpop.permute.xlu0 %852
    %v855 = vmul.f32 %v837, %v853
    %v856 = vpack.c.bf16 %v855, %v855
    %858 = vrot.lane.b32.xlu0 %v856, 104
    %v859 = vpop.permute.xlu0 %858
    %v861 = vsel %vm99, %v859, 0
    %v864 = vsel %vm103, %v69, 0
    %866 = vmatprep.subr.bf16.mxu0 0
    %867 = vmatpush1.bf16.msra.mxu0 %v864
    %868 = vmatprep.subr.bf16.mxu0 0
    %869 = vmatpush1.bf16.msra.mxu0 0
    %870 = vmatprep.subr.bf16.mxu0 0
    %871 = vmatpush1.bf16.msra.mxu0 0
    %872 = vmatprep.subr.bf16.mxu0 0
    %873 = vmatpush1.bf16.msra.mxu0 0
    %874 = vmatprep.subr.bf16.mxu0 0
    %875 = vmatpush1.bf16.msra.mxu0 0
    %876 = vmatprep.subr.bf16.mxu0 0
    %877 = vmatpush1.bf16.msra.mxu0 0
    %878 = vmatprep.subr.bf16.mxu0 0
    %879 = vmatpush1.bf16.msra.mxu0 0
    %880 = vmatprep.subr.bf16.mxu0 0
    %881 = vmatpush1.bf16.msra.mxu0 0
    %882 = vmatprep.subr.bf16.mxu0 0
    %883 = vmatpush1.bf16.msra.mxu0 0
    %884 = vmatprep.subr.bf16.mxu0 0
    %885 = vmatpush1.bf16.msra.mxu0 0
    %886 = vmatprep.subr.bf16.mxu0 0
    %887 = vmatpush1.bf16.msra.mxu0 0
    %888 = vmatprep.subr.bf16.mxu0 0
    %889 = vmatpush1.bf16.msra.mxu0 0
    %890 = vmatprep.subr.bf16.mxu0 0
    %891 = vmatpush1.bf16.msra.mxu0 0
    %892 = vmatprep.subr.bf16.mxu0 0
    %893 = vmatpush1.bf16.msra.mxu0 0
    %894 = vmatprep.subr.bf16.mxu0 0
    %895 = vmatpush1.bf16.msra.mxu0 0
    %896 = vmatprep.subr.bf16.mxu0 0
    %897 = vmatpush1.bf16.msra.mxu0 0
    %898 = vmatprep.mubr.bf16.mxu0 0
    %899 = vmatmul.mubr.bf16.gmra.mrb[0].mxu0 %v861
    %v900 = vpop.f32.mrb[0].mxu0
    %v901 = vadd.f32 0.0, %v900
    %v902 = vpop.f32.mrb[0].mxu0
    %v903 = vpop.f32.mrb[0].mxu0
    %v904 = vpop.f32.mrb[0].mxu0
    %905 = vdwg.mxu0
    %v906 = vadd.f32 %v785, %v901
    %v907 = vrot.slane %v199, 5
    %v909 = vrot.slane %v294, 4
    %v911 = vsel %vm302, %v907, %v909
    %912 = vmatprep.subr.bf16.mxu0 0
    %913 = vmatpush1.bf16.msra.mxu0 %v308
    %914 = vmatprep.subr.bf16.mxu0 0
    %915 = vmatpush1.bf16.msra.mxu0 0
    %916 = vmatprep.subr.bf16.mxu0 0
    %917 = vmatpush1.bf16.msra.mxu0 0
    %918 = vmatprep.subr.bf16.mxu0 0
    %919 = vmatpush1.bf16.msra.mxu0 0
    %920 = vmatprep.subr.bf16.mxu0 0
    %921 = vmatpush1.bf16.msra.mxu0 0
    %922 = vmatprep.subr.bf16.mxu0 0
    %923 = vmatpush1.bf16.msra.mxu0 0
    %924 = vmatprep.subr.bf16.mxu0 0
    %925 = vmatpush1.bf16.msra.mxu0 0
    %926 = vmatprep.subr.bf16.mxu0 0
    %927 = vmatpush1.bf16.msra.mxu0 0
    %928 = vmatprep.subr.bf16.mxu0 0
    %929 = vmatpush1.bf16.msra.mxu0 0
    %930 = vmatprep.subr.bf16.mxu0 0
    %931 = vmatpush1.bf16.msra.mxu0 0
    %932 = vmatprep.subr.bf16.mxu0 0
    %933 = vmatpush1.bf16.msra.mxu0 0
    %934 = vmatprep.subr.bf16.mxu0 0
    %935 = vmatpush1.bf16.msra.mxu0 0
    %936 = vmatprep.subr.bf16.mxu0 0
    %937 = vmatpush1.bf16.msra.mxu0 0
    %938 = vmatprep.subr.bf16.mxu0 0
    %939 = vmatpush1.bf16.msra.mxu0 0
    %940 = vmatprep.subr.bf16.mxu0 0
    %941 = vmatpush1.bf16.msra.mxu0 0
    %942 = vmatprep.subr.bf16.mxu0 0
    %943 = vmatpush1.bf16.msra.mxu0 0
    %944 = vmatprep.mubr.bf16.mxu0 0
    %945 = vmatmul.mubr.bf16.gmra.mrb[0].mxu0 %v861
    %v946 = vpop.f32.mrb[0].mxu0
    %v947 = vadd.f32 0.0, %v946
    %v948 = vpop.f32.mrb[0].mxu0
    %v949 = vpop.f32.mrb[0].mxu0
    %v950 = vpop.f32.mrb[0].mxu0
    %951 = vdwg.mxu0
    %v952 = vadd.f32 %v911, %v947
    %v953 = vxor.u32 %v952, 2147483648
    %v954 = vmul.f32 %v953, 1.442695
    %v955 = vpow.pop %v954
    %v956 = vadd.f32 %v955, 1.0
    %v957 = vrcp.pop %v956
    %v958 = vmul.f32 1.0, %v957
    %v959 = vtanh.pop %v952
    %v960 = vmul.f32 %v958, %v849
    %962 = vrot.lane.b32.xlu0 %v959, 112
    %v963 = vpop.permute.xlu0 %962
    %v965 = vmul.f32 %v958, %v963
    %967 = vrot.lane.b32.xlu0 %v965, 8
    %v968 = vpop.permute.xlu0 %967
    %v970 = vadd.f32 %v960, %v968
    %v971 = vtanh.pop %v970
    %973 = vrot.lane.b32.xlu0 %v971, 16
    %v974 = vpop.permute.xlu0 %973
    %v976 = vmul.f32 %v958, %v974
    %v977 = vpack.c.bf16 %v976, %v976
    %979 = vrot.lane.b32.xlu0 %v977, 104
    %v980 = vpop.permute.xlu0 %979
    %v982 = vsel %vm99, %v980, 0
    %v985 = vsel %vm103, %v70, 0
    %987 = vmatprep.subr.bf16.mxu0 0
    %988 = vmatpush1.bf16.msra.mxu0 %v985
    %989 = vmatprep.subr.bf16.mxu0 0
    %990 = vmatpush1.bf16.msra.mxu0 0
    %991 = vmatprep.subr.bf16.mxu0 0
    %992 = vmatpush1.bf16.msra.mxu0 0
    %993 = vmatprep.subr.bf16.mxu0 0
    %994 = vmatpush1.bf16.msra.mxu0 0
    %995 = vmatprep.subr.bf16.mxu0 0
    %996 = vmatpush1.bf16.msra.mxu0 0
    %997 = vmatprep.subr.bf16.mxu0 0
    %998 = vmatpush1.bf16.msra.mxu0 0
    %999 = vmatprep.subr.bf16.mxu0 0
    %1000 = vmatpush1.bf16.msra.mxu0 0
    %1001 = vmatprep.subr.bf16.mxu0 0
    %1002 = vmatpush1.bf16.msra.mxu0 0
    %1003 = vmatprep.subr.bf16.mxu0 0
    %1004 = vmatpush1.bf16.msra.mxu0 0
    %1005 = vmatprep.subr.bf16.mxu0 0
    %1006 = vmatpush1.bf16.msra.mxu0 0
    %1007 = vmatprep.subr.bf16.mxu0 0
    %1008 = vmatpush1.bf16.msra.mxu0 0
    %1009 = vmatprep.subr.bf16.mxu0 0
    %1010 = vmatpush1.bf16.msra.mxu0 0
    %1011 = vmatprep.subr.bf16.mxu0 0
    %1012 = vmatpush1.bf16.msra.mxu0 0
    %1013 = vmatprep.subr.bf16.mxu0 0
    %1014 = vmatpush1.bf16.msra.mxu0 0
    %1015 = vmatprep.subr.bf16.mxu0 0
    %1016 = vmatpush1.bf16.msra.mxu0 0
    %1017 = vmatprep.subr.bf16.mxu0 0
    %1018 = vmatpush1.bf16.msra.mxu0 0
    %1019 = vmatprep.mubr.bf16.mxu0 0
    %1020 = vmatmul.mubr.bf16.gmra.mrb[0].mxu0 %v982
    %v1021 = vpop.f32.mrb[0].mxu0
    %v1022 = vadd.f32 0.0, %v1021
    %v1023 = vpop.f32.mrb[0].mxu0
    %v1024 = vpop.f32.mrb[0].mxu0
    %v1025 = vpop.f32.mrb[0].mxu0
    %1026 = vdwg.mxu0
    %v1027 = vadd.f32 %v906, %v1022
    %v1028 = vrot.slane %v199, 6
    %v1030 = vrot.slane %v294, 5
    %v1032 = vsel %vm302, %v1028, %v1030
    %1033 = vmatprep.subr.bf16.mxu0 0
    %1034 = vmatpush1.bf16.msra.mxu0 %v308
    %1035 = vmatprep.subr.bf16.mxu0 0
    %1036 = vmatpush1.bf16.msra.mxu0 0
    %1037 = vmatprep.subr.bf16.mxu0 0
    %1038 = vmatpush1.bf16.msra.mxu0 0
    %1039 = vmatprep.subr.bf16.mxu0 0
    %1040 = vmatpush1.bf16.msra.mxu0 0
    %1041 = vmatprep.subr.bf16.mxu0 0
    %1042 = vmatpush1.bf16.msra.mxu0 0
    %1043 = vmatprep.subr.bf16.mxu0 0
    %1044 = vmatpush1.bf16.msra.mxu0 0
    %1045 = vmatprep.subr.bf16.mxu0 0
    %1046 = vmatpush1.bf16.msra.mxu0 0
    %1047 = vmatprep.subr.bf16.mxu0 0
    %1048 = vmatpush1.bf16.msra.mxu0 0
    %1049 = vmatprep.subr.bf16.mxu0 0
    %1050 = vmatpush1.bf16.msra.mxu0 0
    %1051 = vmatprep.subr.bf16.mxu0 0
    %1052 = vmatpush1.bf16.msra.mxu0 0
    %1053 = vmatprep.subr.bf16.mxu0 0
    %1054 = vmatpush1.bf16.msra.mxu0 0
    %1055 = vmatprep.subr.bf16.mxu0 0
    %1056 = vmatpush1.bf16.msra.mxu0 0
    %1057 = vmatprep.subr.bf16.mxu0 0
    %1058 = vmatpush1.bf16.msra.mxu0 0
    %1059 = vmatprep.subr.bf16.mxu0 0
    %1060 = vmatpush1.bf16.msra.mxu0 0
    %1061 = vmatprep.subr.bf16.mxu0 0
    %1062 = vmatpush1.bf16.msra.mxu0 0
    %1063 = vmatprep.subr.bf16.mxu0 0
    %1064 = vmatpush1.bf16.msra.mxu0 0
    %1065 = vmatprep.mubr.bf16.mxu0 0
    %1066 = vmatmul.mubr.bf16.gmra.mrb[0].mxu0 %v982
    %v1067 = vpop.f32.mrb[0].mxu0
    %v1068 = vadd.f32 0.0, %v1067
    %v1069 = vpop.f32.mrb[0].mxu0
    %v1070 = vpop.f32.mrb[0].mxu0
    %v1071 = vpop.f32.mrb[0].mxu0
    %1072 = vdwg.mxu0
    %v1073 = vadd.f32 %v1032, %v1068
    %v1074 = vxor.u32 %v1073, 2147483648
    %v1075 = vmul.f32 %v1074, 1.442695
    %v1076 = vpow.pop %v1075
    %v1077 = vadd.f32 %v1076, 1.0
    %v1078 = vrcp.pop %v1077
    %v1079 = vmul.f32 1.0, %v1078
    %v1080 = vtanh.pop %v1073
    %v1081 = vmul.f32 %v1079, %v970
    %1083 = vrot.lane.b32.xlu0 %v1080, 112
    %v1084 = vpop.permute.xlu0 %1083
    %v1086 = vmul.f32 %v1079, %v1084
    %1088 = vrot.lane.b32.xlu0 %v1086, 8
    %v1089 = vpop.permute.xlu0 %1088
    %v1091 = vadd.f32 %v1081, %v1089
    %v1092 = vtanh.pop %v1091
    %1094 = vrot.lane.b32.xlu0 %v1092, 16
    %v1095 = vpop.permute.xlu0 %1094
    %v1097 = vmul.f32 %v1079, %v1095
    %v1098 = vpack.c.bf16 %v1097, %v1097
    %1100 = vrot.lane.b32.xlu0 %v1098, 104
    %v1101 = vpop.permute.xlu0 %1100
    %v1103 = vsel %vm99, %v1101, 0
    %v1106 = vsel %vm103, %v71, 0
    %1108 = vmatprep.subr.bf16.mxu0 0
    %1109 = vmatpush1.bf16.msra.mxu0 %v1106
    %1110 = vmatprep.subr.bf16.mxu0 0
    %1111 = vmatpush1.bf16.msra.mxu0 0
    %1112 = vmatprep.subr.bf16.mxu0 0
    %1113 = vmatpush1.bf16.msra.mxu0 0
    %1114 = vmatprep.subr.bf16.mxu0 0
    %1115 = vmatpush1.bf16.msra.mxu0 0
    %1116 = vmatprep.subr.bf16.mxu0 0
    %1117 = vmatpush1.bf16.msra.mxu0 0
    %1118 = vmatprep.subr.bf16.mxu0 0
    %1119 = vmatpush1.bf16.msra.mxu0 0
    %1120 = vmatprep.subr.bf16.mxu0 0
    %1121 = vmatpush1.bf16.msra.mxu0 0
    %1122 = vmatprep.subr.bf16.mxu0 0
    %1123 = vmatpush1.bf16.msra.mxu0 0
    %1124 = vmatprep.subr.bf16.mxu0 0
    %1125 = vmatpush1.bf16.msra.mxu0 0
    %1126 = vmatprep.subr.bf16.mxu0 0
    %1127 = vmatpush1.bf16.msra.mxu0 0
    %1128 = vmatprep.subr.bf16.mxu0 0
    %1129 = vmatpush1.bf16.msra.mxu0 0
    %1130 = vmatprep.subr.bf16.mxu0 0
    %1131 = vmatpush1.bf16.msra.mxu0 0
    %1132 = vmatprep.subr.bf16.mxu0 0
    %1133 = vmatpush1.bf16.msra.mxu0 0
    %1134 = vmatprep.subr.bf16.mxu0 0
    %1135 = vmatpush1.bf16.msra.mxu0 0
    %1136 = vmatprep.subr.bf16.mxu0 0
    %1137 = vmatpush1.bf16.msra.mxu0 0
    %1138 = vmatprep.subr.bf16.mxu0 0
    %1139 = vmatpush1.bf16.msra.mxu0 0
    %1140 = vmatprep.mubr.bf16.mxu0 0
    %1141 = vmatmul.mubr.bf16.gmra.mrb[0].mxu0 %v1103
    %v1142 = vpop.f32.mrb[0].mxu0
    %v1143 = vadd.f32 0.0, %v1142
    %v1144 = vpop.f32.mrb[0].mxu0
    %v1145 = vpop.f32.mrb[0].mxu0
    %v1146 = vpop.f32.mrb[0].mxu0
    %1147 = vdwg.mxu0
    %v1148 = vadd.f32 %v1027, %v1143
    %v1149 = vrot.slane %v199, 7
    %v1151 = vrot.slane %v294, 6
    %v1153 = vsel %vm302, %v1149, %v1151
    %1154 = vmatprep.subr.bf16.mxu0 0
    %1155 = vmatpush1.bf16.msra.mxu0 %v308
    %1156 = vmatprep.subr.bf16.mxu0 0
    %1157 = vmatpush1.bf16.msra.mxu0 0
    %1158 = vmatprep.subr.bf16.mxu0 0
    %1159 = vmatpush1.bf16.msra.mxu0 0
    %1160 = vmatprep.subr.bf16.mxu0 0
    %1161 = vmatpush1.bf16.msra.mxu0 0
    %1162 = vmatprep.subr.bf16.mxu0 0
    %1163 = vmatpush1.bf16.msra.mxu0 0
    %1164 = vmatprep.subr.bf16.mxu0 0
    %1165 = vmatpush1.bf16.msra.mxu0 0
    %1166 = vmatprep.subr.bf16.mxu0 0
    %1167 = vmatpush1.bf16.msra.mxu0 0
    %1168 = vmatprep.subr.bf16.mxu0 0
    %1169 = vmatpush1.bf16.msra.mxu0 0
    %1170 = vmatprep.subr.bf16.mxu0 0
    %1171 = vmatpush1.bf16.msra.mxu0 0
    %1172 = vmatprep.subr.bf16.mxu0 0
    %1173 = vmatpush1.bf16.msra.mxu0 0
    %1174 = vmatprep.subr.bf16.mxu0 0
    %1175 = vmatpush1.bf16.msra.mxu0 0
    %1176 = vmatprep.subr.bf16.mxu0 0
    %1177 = vmatpush1.bf16.msra.mxu0 0
    %1178 = vmatprep.subr.bf16.mxu0 0
    %1179 = vmatpush1.bf16.msra.mxu0 0
    %1180 = vmatprep.subr.bf16.mxu0 0
    %1181 = vmatpush1.bf16.msra.mxu0 0
    %1182 = vmatprep.subr.bf16.mxu0 0
    %1183 = vmatpush1.bf16.msra.mxu0 0
    %1184 = vmatprep.subr.bf16.mxu0 0
    %1185 = vmatpush1.bf16.msra.mxu0 0
    %1186 = vmatprep.mubr.bf16.mxu0 0
    %1187 = vmatmul.mubr.bf16.gmra.mrb[0].mxu0 %v1103
    %v1188 = vpop.f32.mrb[0].mxu0
    %v1189 = vadd.f32 0.0, %v1188
    %v1190 = vpop.f32.mrb[0].mxu0
    %v1191 = vpop.f32.mrb[0].mxu0
    %v1192 = vpop.f32.mrb[0].mxu0
    %1193 = vdwg.mxu0
    %v1194 = vadd.f32 %v1153, %v1189
    %v1195 = vxor.u32 %v1194, 2147483648
    %v1196 = vmul.f32 %v1195, 1.442695
    %v1197 = vpow.pop %v1196
    %v1198 = vadd.f32 %v1197, 1.0
    %v1199 = vrcp.pop %v1198
    %v1200 = vmul.f32 1.0, %v1199
    %v1201 = vtanh.pop %v1194
    %v1202 = vmul.f32 %v1200, %v1091
    %1204 = vrot.lane.b32.xlu0 %v1201, 112
    %v1205 = vpop.permute.xlu0 %1204
    %v1207 = vmul.f32 %v1200, %v1205
    %1209 = vrot.lane.b32.xlu0 %v1207, 8
    %v1210 = vpop.permute.xlu0 %1209
    %v1212 = vadd.f32 %v1202, %v1210
    %v1213 = vtanh.pop %v1212
    %1215 = vrot.lane.b32.xlu0 %v1213, 16
    %v1216 = vpop.permute.xlu0 %1215
    %v1218 = vmul.f32 %v1200, %v1216
    %v1219 = vpack.c.bf16 %v1218, %v1218
    %1221 = vrot.lane.b32.xlu0 %v1219, 104
    %v1222 = vpop.permute.xlu0 %1221
    %v1224 = vsel %vm99, %v1222, 0
    %v1227 = vsel %vm103, %v72, 0
    %1229 = vmatprep.subr.bf16.mxu0 0
    %1230 = vmatpush1.bf16.msra.mxu0 %v1227
    %1231 = vmatprep.subr.bf16.mxu0 0
    %1232 = vmatpush1.bf16.msra.mxu0 0
    %1233 = vmatprep.subr.bf16.mxu0 0
    %1234 = vmatpush1.bf16.msra.mxu0 0
    %1235 = vmatprep.subr.bf16.mxu0 0
    %1236 = vmatpush1.bf16.msra.mxu0 0
    %1237 = vmatprep.subr.bf16.mxu0 0
    %1238 = vmatpush1.bf16.msra.mxu0 0
    %1239 = vmatprep.subr.bf16.mxu0 0
    %1240 = vmatpush1.bf16.msra.mxu0 0
    %1241 = vmatprep.subr.bf16.mxu0 0
    %1242 = vmatpush1.bf16.msra.mxu0 0
    %1243 = vmatprep.subr.bf16.mxu0 0
    %1244 = vmatpush1.bf16.msra.mxu0 0
    %1245 = vmatprep.subr.bf16.mxu0 0
    %1246 = vmatpush1.bf16.msra.mxu0 0
    %1247 = vmatprep.subr.bf16.mxu0 0
    %1248 = vmatpush1.bf16.msra.mxu0 0
    %1249 = vmatprep.subr.bf16.mxu0 0
    %1250 = vmatpush1.bf16.msra.mxu0 0
    %1251 = vmatprep.subr.bf16.mxu0 0
    %1252 = vmatpush1.bf16.msra.mxu0 0
    %1253 = vmatprep.subr.bf16.mxu0 0
    %1254 = vmatpush1.bf16.msra.mxu0 0
    %1255 = vmatprep.subr.bf16.mxu0 0
    %1256 = vmatpush1.bf16.msra.mxu0 0
    %1257 = vmatprep.subr.bf16.mxu0 0
    %1258 = vmatpush1.bf16.msra.mxu0 0
    %1259 = vmatprep.subr.bf16.mxu0 0
    %1260 = vmatpush1.bf16.msra.mxu0 0
    %1261 = vmatprep.mubr.bf16.mxu0 0
    %1262 = vmatmul.mubr.bf16.gmra.mrb[0].mxu0 %v1224
    %v1263 = vpop.f32.mrb[0].mxu0
    %v1264 = vadd.f32 0.0, %v1263
    %v1265 = vpop.f32.mrb[0].mxu0
    %v1266 = vpop.f32.mrb[0].mxu0
    %v1267 = vpop.f32.mrb[0].mxu0
    %1268 = vdwg.mxu0
    %v1269 = vadd.f32 %v1148, %v1264
    %v1271 = vlaneseq
    %v1272 = vshrl.u32 %v1271, 7
    %v1273 = vsub.s32 0, %v1272
    %v1274 = vrot.slane %v73, %v1273
    %v1276 = vadd.f32 %v1269, %v1274
    %v1277 = vmax.f32 %v1276, 0.0
    %v1278 = vpack.c.bf16 %v1277, %v1277
    %v1280 = vlaneseq
    %v1281 = vshrl.u32 %v1280, 7
    %v1282 = vsub.s32 0, %v1281
    %v1283 = vrot.slane %v75, %v1282
    %v1286 = vsel %vm99, %v1278, 0
    %v1289 = vsel %vm103, %v74, 0
    %1291 = vmatprep.subr.bf16.mxu0 0
    %1292 = vmatpush1.bf16.msra.mxu0 %v1289
    %1293 = vmatprep.subr.bf16.mxu0 0
    %1294 = vmatpush1.bf16.msra.mxu0 0
    %1295 = vmatprep.subr.bf16.mxu0 0
    %1296 = vmatpush1.bf16.msra.mxu0 0
    %1297 = vmatprep.subr.bf16.mxu0 0
    %1298 = vmatpush1.bf16.msra.mxu0 0
    %1299 = vmatprep.subr.bf16.mxu0 0
    %1300 = vmatpush1.bf16.msra.mxu0 0
    %1301 = vmatprep.subr.bf16.mxu0 0
    %1302 = vmatpush1.bf16.msra.mxu0 0
    %1303 = vmatprep.subr.bf16.mxu0 0
    %1304 = vmatpush1.bf16.msra.mxu0 0
    %1305 = vmatprep.subr.bf16.mxu0 0
    %1306 = vmatpush1.bf16.msra.mxu0 0
    %1307 = vmatprep.subr.bf16.mxu0 0
    %1308 = vmatpush1.bf16.msra.mxu0 0
    %1309 = vmatprep.subr.bf16.mxu0 0
    %1310 = vmatpush1.bf16.msra.mxu0 0
    %1311 = vmatprep.subr.bf16.mxu0 0
    %1312 = vmatpush1.bf16.msra.mxu0 0
    %1313 = vmatprep.subr.bf16.mxu0 0
    %1314 = vmatpush1.bf16.msra.mxu0 0
    %1315 = vmatprep.subr.bf16.mxu0 0
    %1316 = vmatpush1.bf16.msra.mxu0 0
    %1317 = vmatprep.subr.bf16.mxu0 0
    %1318 = vmatpush1.bf16.msra.mxu0 0
    %1319 = vmatprep.subr.bf16.mxu0 0
    %1320 = vmatpush1.bf16.msra.mxu0 0
    %1321 = vmatprep.subr.bf16.mxu0 0
    %1322 = vmatpush1.bf16.msra.mxu0 0
    %1323 = vmatprep.mubr.bf16.mxu0 0
    %1324 = vmatmul.mubr.bf16.gmra.mrb[0].mxu0 %v1286
    %v1325 = vpop.f32.mrb[0].mxu0
    %v1326 = vadd.f32 %v1283, %v1325
    %v1327 = vpop.f32.mrb[0].mxu0
    %v1328 = vpop.f32.mrb[0].mxu0
    %v1329 = vpop.f32.mrb[0].mxu0
    %1330 = vdwg.mxu0
    %vm1331 = vcmask 58368
    %v1332 = vsel %vm1331, %v1326, -inf
    %1333 = vmax.xlane.f32.xlu0 %v1332
    %v1334 = vpop.xlane.xlu0 %1333
    %v1335 = vsub.f32 %v1326, %v1334
    %v1336 = vmul.f32 %v1335, 1.442695
    %v1337 = vpow.pop %v1336
    %v1338 = vsel %vm1331, %v1337, 0.0
    %1339 = vadd.xlane.f32.xlu0 %v1338
    %v1340 = vpop.xlane.xlu0 %1339
    %v1341 = vlog2.pop %v1340
    %v1342 = vmul.f32 %v1341, 0.6931472
    %v1343 = vadd.f32 %v1334, %v1342
    %v1344 = vsub.f32 %v1326, %v1343
    %1345 = vst.msk [vmem:[#allocation6] sm:$0x3] %vm1331, %v1344
    %v1346 = vld [vmem:[%s12] sm:$0x3]
    %v1347 = vadd.f32 %v1344, %v1346
    %v1348 = vmul.f32 %v1347, 2.0
    %v1349 = vsel %vm1331, %v1348, -inf
    %1350 = vmax.xlane.f32.xlu0 %v1349
    %v1351 = vpop.xlane.xlu0 %1350
    %v1352 = vsub.f32 %v1348, %v1351
    %v1353 = vmul.f32 %v1352, 1.442695
    %v1354 = vpow.pop %v1353
    %v1355 = vsel %vm1331, %v1354, 0.0
    %1356 = vadd.xlane.f32.xlu0 %v1355
    %v1357 = vpop.xlane.xlu0 %1356
    %v1358 = vrcp.pop %v1357
    %v1359 = vmul.f32 %v1354, %v1358
    %v1360 = vld [vmem:[%s13] sm:$0xff]
    %v1361 = vsel %vm160, %v1360, 0.0
    %1362 = vadd.xlane.f32.xlu0 %v1361
    %v1363 = vpop.xlane.xlu0 %1362
    %v1364 = vrcp.pop %v1363
    %v1365 = vmul.f32 %v1360, %v1364
    %v1366 = vpack.c.bf16 %v1359, %v1359
    %v1367 = vpack.c.bf16 %v1365, %v1365
    %v1369 = vsel %vm99, %v1366, 0
    %v1372 = vsel %vm103, %v1367, 0
    %1374 = vmatprep.subr.bf16.mxu0 0
    %1375 = vmatpush1.bf16.msra.mxu0 %v1372
    %1376 = vmatprep.subr.bf16.mxu0 0
    %1377 = vmatpush1.bf16.msra.mxu0 0
    %1378 = vmatprep.subr.bf16.mxu0 0
    %1379 = vmatpush1.bf16.msra.mxu0 0
    %1380 = vmatprep.subr.bf16.mxu0 0
    %1381 = vmatpush1.bf16.msra.mxu0 0
    %1382 = vmatprep.subr.bf16.mxu0 0
    %1383 = vmatpush1.bf16.msra.mxu0 0
    %1384 = vmatprep.subr.bf16.mxu0 0
    %1385 = vmatpush1.bf16.msra.mxu0 0
    %1386 = vmatprep.subr.bf16.mxu0 0
    %1387 = vmatpush1.bf16.msra.mxu0 0
    %1388 = vmatprep.subr.bf16.mxu0 0
    %1389 = vmatpush1.bf16.msra.mxu0 0
    %1390 = vmatprep.subr.bf16.mxu0 0
    %1391 = vmatpush1.bf16.msra.mxu0 0
    %1392 = vmatprep.subr.bf16.mxu0 0
    %1393 = vmatpush1.bf16.msra.mxu0 0
    %1394 = vmatprep.subr.bf16.mxu0 0
    %1395 = vmatpush1.bf16.msra.mxu0 0
    %1396 = vmatprep.subr.bf16.mxu0 0
    %1397 = vmatpush1.bf16.msra.mxu0 0
    %1398 = vmatprep.subr.bf16.mxu0 0
    %1399 = vmatpush1.bf16.msra.mxu0 0
    %1400 = vmatprep.subr.bf16.mxu0 0
    %1401 = vmatpush1.bf16.msra.mxu0 0
    %1402 = vmatprep.subr.bf16.mxu0 0
    %1403 = vmatpush1.bf16.msra.mxu0 0
    %1404 = vmatprep.subr.bf16.mxu0 0
    %1405 = vmatpush1.bf16.msra.mxu0 0
    %1406 = vmatprep.mubr.bf16.mxu0 0
    %1407 = vmatmul.mubr.bf16.gmra.mrb[0].mxu0 %v1369
    %v1408 = vpop.f32.mrb[0].mxu0
    %v1409 = vadd.f32 0.0, %v1408
    %v1410 = vpop.f32.mrb[0].mxu0
    %v1411 = vpop.f32.mrb[0].mxu0
    %v1412 = vpop.f32.mrb[0].mxu0
    %1413 = vdwg.mxu0
    %vm1414 = vcmask 123904
    %1415 = vst.msk [vmem:[#allocation2] sm:$0x3] %vm1414, %v1409
    %v1416 = vld [vmem:[%s14] sm:$0x3]
    %v1417 = vsel %vm1331, %v1416, 0.0
    %1418 = vadd.xlane.f32.xlu0 %v1417
    %v1419 = vpop.xlane.xlu0 %1418
    %v1420 = vrcp.pop %v1419
    %v1421 = vmul.f32 %v1416, %v1420
    %1422 = vst.msk [vmem:[#allocation4] sm:$0x3] %vm1331, %v1421
    // Predicated region
    $region62: #{tpu_custom_call.1} parent=1 // pred_check
      _
    $region63: #{tpu_custom_call.1} parent=1 // pred_check_branch
      %1424 = sbr.rel (0) target = $region65
    $region64: #{tpu_custom_call.1} parent=1 // pred_region
      %s1426 = ssub.s32 32, 32
      %1427 = vsyncadd [#allocation3], %s1426
      %s1429 = sshll.u32 [#allocation2], 4
      %s1430 = int_to_ptr.vmem [resolvable:$true] %s1429
      %1432 = dma.vmem_to_hbm [thread:$0]  %s1430, 32, %s15, [#allocation3]
    $region65: #{tpu_custom_call.1} parent=1 // pred_fallthru
      _
    // Predicated region
    $region66: #{tpu_custom_call.1} parent=1 // pred_check
      _
    $region67: #{tpu_custom_call.1} parent=1 // pred_check_branch
      %1434 = sbr.rel (0) target = $region69
    $region68: #{tpu_custom_call.1} parent=1 // pred_region
      %s1436 = ssub.s32 32, 32
      %1437 = vsyncadd [#allocation5], %s1436
      %s1439 = sshll.u32 [#allocation4], 4
      %s1440 = int_to_ptr.vmem [resolvable:$true] %s1439
      %1442 = dma.vmem_to_hbm [thread:$0]  %s1440, 32, %s16, [#allocation5]
    $region69: #{tpu_custom_call.1} parent=1 // pred_fallthru
      _
    // Predicated region
    $region70: #{tpu_custom_call.1} parent=1 // pred_check
      _
    $region71: #{tpu_custom_call.1} parent=1 // pred_check_branch
      %1444 = sbr.rel (0) target = $region73
    $region72: #{tpu_custom_call.1} parent=1 // pred_region
      %s1446 = ssub.s32 32, 32
      %1447 = vsyncadd [#allocation5], %s1446
      %s1449 = sshll.u32 [#allocation6], 4
      %s1450 = int_to_ptr.vmem [resolvable:$true] %s1449
      %1452 = dma.vmem_to_hbm [thread:$0]  %s1450, 32, %s17, [#allocation5]
    $region73: #{tpu_custom_call.1} parent=1 // pred_fallthru
      _
    // Predicated region
    $region74: #{tpu_custom_call.1} parent=1 // pred_check
      _
    $region75: #{tpu_custom_call.1} parent=1 // pred_check_branch
      %1454 = sbr.rel (0) target = $region77
    $region76: #{tpu_custom_call.1} parent=1 // pred_region
      %1455 = dma.done [#allocation3], 32
    $region77: #{tpu_custom_call.1} parent=1 // pred_fallthru
      _
    // Predicated region
    $region78: #{tpu_custom_call.1} parent=1 // pred_check
      _
    $region79: #{tpu_custom_call.1} parent=1 // pred_check_branch
      %1457 = sbr.rel (0) target = $region81
    $region80: #{tpu_custom_call.1} parent=1 // pred_region
      %1458 = dma.done [#allocation5], 32
    $region81: #{tpu_custom_call.1} parent=1 // pred_fallthru
      _
    // Predicated region
    $region82: #{tpu_custom_call.1} parent=1 // pred_check
      _
    $region83: #{tpu_custom_call.1} parent=1 // pred_check_branch
      %1460 = sbr.rel (0) target = $region85
    $region84: #{tpu_custom_call.1} parent=1 // pred_region
      %1461 = dma.done [#allocation5], 32
    $region85: #{tpu_custom_call.1} parent=1 // pred_fallthru
      _
    %1462 = vsyncpa [#allocation3], 1
    %1463 = vsyncpa [#allocation5], 1

</llo_original>
